<compile_context>
chip_gen: v7x
topology: tpu7x:2x2x1
jax: 0.10.0
libtpu: 0.0.40
codegen_flags: <defaults>
</compile_context>

<pallas_src>
import functools

import jax
import jax.numpy as jnp
from jax.experimental import pallas as pl
from jax.experimental.pallas import tpu as pltpu


# ----------------------------------------------------------------------------
# In-kernel helpers (f32 math)
# ----------------------------------------------------------------------------
def _layernorm(x, g, b, eps):
    mean = jnp.mean(x, axis=-1, keepdims=True)
    xc = x - mean
    var = jnp.mean(xc * xc, axis=-1, keepdims=True)
    return xc * jax.lax.rsqrt(var + eps) * g + b


def _gelu(x):
    # TODO(synk): HF BERT default is exact erf-GELU; tanh approximation used
    # here for robust EUP lowering (outputs drift ~1e-3 vs PyTorch reference).
    return 0.5 * x * (1.0 + jnp.tanh(0.7978845608028654 * (x + 0.044715 * x * x * x)))


def _pick_block_batch(B, S, target_m=256):
    """Pick Bb sequences per grid step: pack the matmul M dim (Bb*S) toward the
    256-wide v6e/v7x MXU while keeping >= 2 grid steps when B allows so both
    v7x TensorCores get balanced work (v5e/v6e: single TC, no harm)."""
    divisors = [d for d in range(1, B + 1) if B % d == 0]
    two_step = [d for d in divisors if d * S <= target_m and B // d >= 2]
    if two_step:
        return max(two_step)
    within = [d for d in divisors if d * S <= target_m]
    return max(within) if within else 1


# ----------------------------------------------------------------------------
# Kernel 1: one fully-fused transformer layer (Bb sequences per grid step)
# ----------------------------------------------------------------------------
def _bert_layer_kernel(h_ref, in_ln_g_ref, in_ln_b_ref,
                       wqkv_ref, bqkv_ref, wo_ref, bo_ref,
                       ln1_g_ref, ln1_b_ref,
                       w1_ref, b1_ref, w2_ref, b2_ref,
                       ln2_g_ref, ln2_b_ref, o_ref,
                       *, num_heads, head_dim, eps, apply_input_ln):
    H = num_heads * head_dim
    Bb, S, _ = h_ref.shape
    M = Bb * S

    h_in = h_ref[...].astype(jnp.float32)                  # (Bb, S, H)
    if apply_input_ln:
        # Embedding LayerNorm fused into layer 0 (saves an HBM round trip).
        h_in = _layernorm(h_in, in_ln_g_ref[...], in_ln_b_ref[...], eps)
    x = h_in.reshape(M, H)                                  # packed M = Bb*S rows

    # Fused QKV projection: bf16 MXU operands, f32 accumulation.
    # (Q weights / Q bias are pre-scaled by 1/sqrt(head_dim) at init.)
    qkv = jnp.dot(x.astype(jnp.bfloat16), wqkv_ref[...],
                  preferred_element_type=jnp.float32) + bqkv_ref[...]

    # Batched multi-head attention: heads folded into a leading batch dim so
    # scores and context are ONE batched MXU call each (no per-head loop).
    # TODO(synk): real BertModel applies an extended attention mask for padded
    # tokens; here all tokens are treated as valid.
    def to_heads(mat2d):                                    # (M, H) -> (nh*Bb, S, dh)
        m3 = mat2d.reshape(Bb, S, H)
        return jnp.concatenate(
            [m3[:, :, hd * head_dim:(hd + 1) * head_dim] for hd in range(num_heads)],
            axis=0)

    q = to_heads(qkv[:, :H]).astype(jnp.bfloat16)
    k = to_heads(qkv[:, H:2 * H]).astype(jnp.bfloat16)
    v = to_heads(qkv[:, 2 * H:]).astype(jnp.bfloat16)

    s = jnp.einsum('bqd,bkd->bqk', q, k, preferred_element_type=jnp.float32)
    s = s - jnp.max(s, axis=-1, keepdims=True)
    p = jnp.exp(s)
    p = p * pl.reciprocal(jnp.sum(p, axis=-1, keepdims=True), approx=True)
    ctx = jnp.einsum('bqk,bkd->bqd', p.astype(jnp.bfloat16), v,
                     preferred_element_type=jnp.float32)    # (nh*Bb, S, dh)
    ctx = jnp.concatenate(
        [ctx[hd * Bb:(hd + 1) * Bb] for hd in range(num_heads)], axis=-1)  # (Bb,S,H)
    ctx = ctx.reshape(M, H)

    attn = jnp.dot(ctx.astype(jnp.bfloat16), wo_ref[...],
                   preferred_element_type=jnp.float32) + bo_ref[...]
    h1 = _layernorm(attn + x, ln1_g_ref[...], ln1_b_ref[...], eps)

    inter = _gelu(jnp.dot(h1.astype(jnp.bfloat16), w1_ref[...],
                          preferred_element_type=jnp.float32) + b1_ref[...])
    ffn = jnp.dot(inter.astype(jnp.bfloat16), w2_ref[...],
                  preferred_element_type=jnp.float32) + b2_ref[...]
    out = _layernorm(ffn + h1, ln2_g_ref[...], ln2_b_ref[...], eps)
    o_ref[...] = out.reshape(Bb, S, H).astype(o_ref.dtype)  # bf16 residual stream


def bert_layer(h, layer, emb_ln_g, emb_ln_b, *, num_heads, apply_input_ln,
               block_batch, eps=1e-12):
    B, S, H = h.shape
    head_dim = H // num_heads
    I = layer["w1"].shape[1]
    Bb = block_batch
    assert B % Bb == 0

    def fullblock(r, c):
        return pl.BlockSpec((r, c), lambda b: (0, 0))

    args = (h,
            emb_ln_g.reshape(1, H), emb_ln_b.reshape(1, H),
            layer["wqkv"], layer["bqkv"].reshape(1, 3 * H),
            layer["wo"], layer["bo"].reshape(1, H),
            layer["ln1_g"].reshape(1, H), layer["ln1_b"].reshape(1, H),
            layer["w1"], layer["b1"].reshape(1, I),
            layer["w2"], layer["b2"].reshape(1, H),
            layer["ln2_g"].reshape(1, H), layer["ln2_b"].reshape(1, H))

    # Advisory cost estimate: projections + FFN + attention flops, exp/tanh
    # transcendentals, weight + activation HBM traffic.
    flops = int(2 * B * S * (4 * H * H + 2 * H * I) + 4 * B * S * S * H)
    transcendentals = int(B * num_heads * S * S + B * S * I)
    bytes_accessed = int(sum(int(a.size) * a.dtype.itemsize for a in args)
                         + B * S * H * h.dtype.itemsize)

    # Explicit VMEM budget (default scoped limit — 16 MiB v5e / 32 MiB v6e+ —
    # is the binding limit, not physical VMEM).
    vmem_limit = int(min(max(4 * bytes_accessed, 32 * 2 ** 20), 100 * 2 ** 20))
    # TODO(synk): at BERT-base scale on v7x (64 MiB VMEM) additionally
    # single-buffer the grid-constant weight blocks to halve weight residency.

    return pl.pallas_call(
        functools.partial(_bert_layer_kernel, num_heads=num_heads,
                          head_dim=head_dim, eps=eps,
                          apply_input_ln=apply_input_ln),
        grid=(B // Bb,),
        in_specs=[
            pl.BlockSpec((Bb, S, H), lambda b: (b, 0, 0)),
            fullblock(1, H), fullblock(1, H),
            fullblock(H, 3 * H), fullblock(1, 3 * H),
            fullblock(H, H), fullblock(1, H),
            fullblock(1, H), fullblock(1, H),
            fullblock(H, I), fullblock(1, I),
            fullblock(I, H), fullblock(1, H),
            fullblock(1, H), fullblock(1, H),
        ],
        out_specs=pl.BlockSpec((Bb, S, H), lambda b: (b, 0, 0)),
        out_shape=jax.ShapeDtypeStruct((B, S, H), jnp.bfloat16),
        compiler_params=pltpu.CompilerParams(
            dimension_semantics=("parallel",),
            vmem_limit_bytes=vmem_limit),
        cost_estimate=pl.CostEstimate(flops=flops,
                                      transcendentals=transcendentals,
                                      bytes_accessed=bytes_accessed),
    )(*args)


# ----------------------------------------------------------------------------
# Kernel 2: pooler — dense + tanh on the [CLS] rows only (no (B,S,H) DMA)
# ----------------------------------------------------------------------------
def _pooler_kernel(cls_ref, w_ref, b_ref, o_ref):
    y = jnp.dot(cls_ref[...].astype(jnp.bfloat16), w_ref[...],
                preferred_element_type=jnp.float32) + b_ref[...]
    o_ref[...] = jnp.tanh(y)


def pooler(cls_rows, w, b):
    B, H = cls_rows.shape
    return pl.pallas_call(
        _pooler_kernel,
        grid=(1,),
        in_specs=[
            pl.BlockSpec((B, H), lambda i: (0, 0)),
            pl.BlockSpec((H, H), lambda i: (0, 0)),
            pl.BlockSpec((1, H), lambda i: (0, 0)),
        ],
        out_specs=pl.BlockSpec((B, H), lambda i: (0, 0)),
        out_shape=jax.ShapeDtypeStruct((B, H), jnp.float32),
        cost_estimate=pl.CostEstimate(
            flops=int(2 * B * H * H), transcendentals=int(B * H),
            bytes_accessed=int(B * H * 2 + H * H * 2 + H * 4 + B * H * 4)),
    )(cls_rows, w, b.reshape(1, H))


# ----------------------------------------------------------------------------
# Synthetic BERT parameters (deterministic init, QKV pre-fused, bf16 MXU weights,
# 1/sqrt(head_dim) folded into the Q weight and Q bias)
# ----------------------------------------------------------------------------
def init_params(key, *, vocab=100, type_vocab=2, max_pos=16, hidden=128,
                num_heads=2, intermediate=256, num_layers=2):
    head_dim = hidden // num_heads
    q_scale = 1.0 / float(head_dim) ** 0.5
    keys = iter(jax.random.split(key, 8 + num_layers * 16))

    def w(shape, dtype=jnp.float32):
        return (0.02 * jax.random.normal(next(keys), shape, jnp.float32)).astype(dtype)

    params = {
        "word_emb": w((vocab, hidden)),
        "pos_emb": w((max_pos, hidden)),
        "type_emb": w((type_vocab, hidden)),
        "emb_ln_g": jnp.ones((hidden,), jnp.float32),
        "emb_ln_b": jnp.zeros((hidden,), jnp.float32),
        "pooler_w": w((hidden, hidden), jnp.bfloat16),
        "pooler_b": w((hidden,)),
        "layers": [],
    }
    for _ in range(num_layers):
        wq, wk, wv = w((hidden, hidden)), w((hidden, hidden)), w((hidden, hidden))
        bq, bk, bv = w((hidden,)), w((hidden,)), w((hidden,))
        layer = {
            # Attention scale folded into Q weight AND Q bias.
            "wqkv": jnp.concatenate([wq * q_scale, wk, wv], axis=1).astype(jnp.bfloat16),
            "bqkv": jnp.concatenate([bq * q_scale, bk, bv], axis=0),
            "wo": w((hidden, hidden), jnp.bfloat16),
            "bo": w((hidden,)),
            "ln1_g": jnp.ones((hidden,), jnp.float32),
            "ln1_b": jnp.zeros((hidden,), jnp.float32),
            "w1": w((hidden, intermediate), jnp.bfloat16),
            "b1": w((intermediate,)),
            "w2": w((intermediate, hidden), jnp.bfloat16),
            "b2": w((hidden,)),
            "ln2_g": jnp.ones((hidden,), jnp.float32),
            "ln2_b": jnp.zeros((hidden,), jnp.float32),
        }
        params["layers"].append(layer)
    return params


# ----------------------------------------------------------------------------
# WordBertEncoder.forward (eval mode: pooled output, dropout is identity)
# ----------------------------------------------------------------------------
def word_bert_encoder_forward(params, input_ids, token_type_ids, *, num_heads=2):
    B, S = input_ids.shape

    # Embedding table gathers are plain-JAX glue; everything dense runs in Pallas.
    pos_ids = jnp.arange(S, dtype=jnp.int32)
    emb = (jnp.take(params["word_emb"], input_ids, axis=0)
           + jnp.take(params["pos_emb"], pos_ids, axis=0)[None, :, :]
           + jnp.take(params["type_emb"], token_type_ids, axis=0))
    # Residual stream carried bf16 between layers (halves HBM traffic);
    # LayerNorm / softmax math stays f32 inside the kernels.
    h = emb.astype(jnp.bfloat16)

    Bb = _pick_block_batch(B, S)
    for li, layer in enumerate(params["layers"]):
        h = bert_layer(h, layer, params["emb_ln_g"], params["emb_ln_b"],
                       num_heads=num_heads, apply_input_ln=(li == 0),
                       block_batch=Bb)

    # Pooler: dense + tanh on the [CLS] token only; self.pooled == True -> reps.
    # Eval mode: self.training is False, so dropout is identity.
    cls_rows = h[:, 0, :]
    return pooler(cls_rows, params["pooler_w"], params["pooler_b"])


# ----------------------------------------------------------------------------
if __name__ == "__main__":
    B, S = 2, 8
    VOCAB, TYPE_VOCAB, MAX_POS = 100, 2, 16
    HIDDEN, HEADS, INTER, LAYERS = 128, 2, 256, 2

    key = jax.random.PRNGKey(0)
    k_param, k_ids = jax.random.split(key)

    params = init_params(k_param, vocab=VOCAB, type_vocab=TYPE_VOCAB,
                         max_pos=MAX_POS, hidden=HIDDEN, num_heads=HEADS,
                         intermediate=INTER, num_layers=LAYERS)

    input_ids = jax.random.randint(k_ids, (B, S), 0, VOCAB, dtype=jnp.int32)
    token_type_ids = jnp.zeros((B, S), dtype=jnp.int32)

    reps = word_bert_encoder_forward(params, input_ids, token_type_ids,
                                     num_heads=HEADS)
    jax.block_until_ready(reps)
    assert reps.shape == (B, HIDDEN)
    assert bool(jnp.all(jnp.isfinite(reps)))
    print("KERNEL_OK")
</pallas_src>

<mosaic_0001>
module attributes {stable_mosaic.version = 11 : i64} {
  func.func @_bert_layer_kernel(%arg0: i32, %arg1: memref<1x8x128xbf16, #tpu.memory_space<vmem>>, %arg2: memref<1x128xf32, #tpu.memory_space<vmem>>, %arg3: memref<1x128xf32, #tpu.memory_space<vmem>>, %arg4: memref<128x384xbf16, #tpu.memory_space<vmem>>, %arg5: memref<1x384xf32, #tpu.memory_space<vmem>>, %arg6: memref<128x128xbf16, #tpu.memory_space<vmem>>, %arg7: memref<1x128xf32, #tpu.memory_space<vmem>>, %arg8: memref<1x128xf32, #tpu.memory_space<vmem>>, %arg9: memref<1x128xf32, #tpu.memory_space<vmem>>, %arg10: memref<128x256xbf16, #tpu.memory_space<vmem>>, %arg11: memref<1x256xf32, #tpu.memory_space<vmem>>, %arg12: memref<256x128xbf16, #tpu.memory_space<vmem>>, %arg13: memref<1x128xf32, #tpu.memory_space<vmem>>, %arg14: memref<1x128xf32, #tpu.memory_space<vmem>>, %arg15: memref<1x128xf32, #tpu.memory_space<vmem>>, %arg16: memref<1x8x128xbf16, #tpu.memory_space<vmem>>) attributes {dimension_semantics = [#tpu.dimension_semantics<parallel>], iteration_bounds = array<i64: 2>, scalar_prefetch = 0 : i64, scratch_operands = 0 : i64, tpu.core_type = #tpu.core_type<tc>, window_params = [{transform_indices = @transform_0, window_bounds = array<i64: 1, 8, 128>}, {pipeline_mode = #tpu.pipeline_mode<synchronous>, transform_indices = @transform_1, window_bounds = array<i64: 1, 128>}, {pipeline_mode = #tpu.pipeline_mode<synchronous>, transform_indices = @transform_2, window_bounds = array<i64: 1, 128>}, {pipeline_mode = #tpu.pipeline_mode<synchronous>, transform_indices = @transform_3, window_bounds = array<i64: 128, 384>}, {pipeline_mode = #tpu.pipeline_mode<synchronous>, transform_indices = @transform_4, window_bounds = array<i64: 1, 384>}, {pipeline_mode = #tpu.pipeline_mode<synchronous>, transform_indices = @transform_5, window_bounds = array<i64: 128, 128>}, {pipeline_mode = #tpu.pipeline_mode<synchronous>, transform_indices = @transform_6, window_bounds = array<i64: 1, 128>}, {pipeline_mode = #tpu.pipeline_mode<synchronous>, transform_indices = @transform_7, window_bounds = array<i64: 1, 128>}, {pipeline_mode = #tpu.pipeline_mode<synchronous>, transform_indices = @transform_8, window_bounds = array<i64: 1, 128>}, {pipeline_mode = #tpu.pipeline_mode<synchronous>, transform_indices = @transform_9, window_bounds = array<i64: 128, 256>}, {pipeline_mode = #tpu.pipeline_mode<synchronous>, transform_indices = @transform_10, window_bounds = array<i64: 1, 256>}, {pipeline_mode = #tpu.pipeline_mode<synchronous>, transform_indices = @transform_11, window_bounds = array<i64: 256, 128>}, {pipeline_mode = #tpu.pipeline_mode<synchronous>, transform_indices = @transform_12, window_bounds = array<i64: 1, 128>}, {pipeline_mode = #tpu.pipeline_mode<synchronous>, transform_indices = @transform_13, window_bounds = array<i64: 1, 128>}, {pipeline_mode = #tpu.pipeline_mode<synchronous>, transform_indices = @transform_14, window_bounds = array<i64: 1, 128>}, {transform_indices = @transform_15, window_bounds = array<i64: 1, 8, 128>}]} {
    %c0 = arith.constant 0 : index
    %c0_0 = arith.constant 0 : index
    %c0_1 = arith.constant 0 : index
    %0 = vector.load %arg1[%c0, %c0_0, %c0_1] : memref<1x8x128xbf16, #tpu.memory_space<vmem>>, vector<1x8x128xbf16>
    %1 = arith.extf %0 : vector<1x8x128xbf16> to vector<1x8x128xf32>
    %c0_2 = arith.constant 0 : index
    %c0_3 = arith.constant 0 : index
    %2 = vector.load %arg2[%c0_2, %c0_3] : memref<1x128xf32, #tpu.memory_space<vmem>>, vector<1x128xf32>
    %c0_4 = arith.constant 0 : index
    %c0_5 = arith.constant 0 : index
    %3 = vector.load %arg3[%c0_4, %c0_5] : memref<1x128xf32, #tpu.memory_space<vmem>>, vector<1x128xf32>
    %cst = arith.constant dense<0.000000e+00> : vector<1x8xf32>
    %4 = vector.multi_reduction <add>, %1, %cst [2] : vector<1x8x128xf32> to vector<1x8xf32>
    %5 = vector.shape_cast %4 : vector<1x8xf32> to vector<1x8x1xf32>
    %cst_6 = arith.constant 1.280000e+02 : f32
    %6 = vector.broadcast %cst_6 : f32 to vector<1x8x1xf32>
    %7 = arith.divf %5, %6 : vector<1x8x1xf32>
    %8 = vector.broadcast %7 : vector<1x8x1xf32> to vector<1x8x128xf32>
    %9 = arith.subf %1, %8 : vector<1x8x128xf32>
    %10 = arith.mulf %9, %9 : vector<1x8x128xf32>
    %cst_7 = arith.constant dense<0.000000e+00> : vector<1x8xf32>
    %11 = vector.multi_reduction <add>, %10, %cst_7 [2] : vector<1x8x128xf32> to vector<1x8xf32>
    %12 = vector.shape_cast %11 : vector<1x8xf32> to vector<1x8x1xf32>
    %cst_8 = arith.constant 1.280000e+02 : f32
    %13 = vector.broadcast %cst_8 : f32 to vector<1x8x1xf32>
    %14 = arith.divf %12, %13 : vector<1x8x1xf32>
    %cst_9 = arith.constant 9.99999996E-13 : f32
    %15 = vector.broadcast %cst_9 : f32 to vector<1x8x1xf32>
    %16 = arith.addf %14, %15 : vector<1x8x1xf32>
    %17 = math.rsqrt %16 : vector<1x8x1xf32>
    %18 = vector.broadcast %17 : vector<1x8x1xf32> to vector<1x8x128xf32>
    %19 = arith.mulf %9, %18 : vector<1x8x128xf32>
    %20 = vector.shape_cast %2 : vector<1x128xf32> to vector<1x1x128xf32>
    %21 = vector.broadcast %20 : vector<1x1x128xf32> to vector<1x8x128xf32>
    %22 = arith.mulf %19, %21 : vector<1x8x128xf32>
    %23 = vector.shape_cast %3 : vector<1x128xf32> to vector<1x1x128xf32>
    %24 = vector.broadcast %23 : vector<1x1x128xf32> to vector<1x8x128xf32>
    %25 = arith.addf %22, %24 : vector<1x8x128xf32>
    %26 = vector.shape_cast %25 : vector<1x8x128xf32> to vector<8x128xf32>
    %27 = arith.truncf %26 : vector<8x128xf32> to vector<8x128xbf16>
    %c0_10 = arith.constant 0 : index
    %c0_11 = arith.constant 0 : index
    %28 = vector.load %arg4[%c0_10, %c0_11] : memref<128x384xbf16, #tpu.memory_space<vmem>>, vector<128x384xbf16>
    %cst_12 = arith.constant dense<0.000000e+00> : vector<8x384xf32>
    %29 = tpu.matmul %27, %28, %cst_12 {dimension_numbers = #tpu.dot_dimension_numbers<[1], [0], [0], [1], [0, 0, 1, 1], [], []>} : vector<8x128xbf16>, vector<128x384xbf16>, vector<8x384xf32> -> vector<8x384xf32>
    %c0_13 = arith.constant 0 : index
    %c0_14 = arith.constant 0 : index
    %30 = vector.load %arg5[%c0_13, %c0_14] : memref<1x384xf32, #tpu.memory_space<vmem>>, vector<1x384xf32>
    %31 = vector.broadcast %30 : vector<1x384xf32> to vector<8x384xf32>
    %32 = arith.addf %29, %31 : vector<8x384xf32>
    %33 = vector.extract_strided_slice %32 {offsets = [0, 0], sizes = [8, 128], strides = [1, 1]} : vector<8x384xf32> to vector<8x128xf32>
    %34 = vector.shape_cast %33 : vector<8x128xf32> to vector<1x8x128xf32>
    %35 = vector.extract_strided_slice %34 {offsets = [0, 0, 0], sizes = [1, 8, 64], strides = [1, 1, 1]} : vector<1x8x128xf32> to vector<1x8x64xf32>
    %36 = vector.extract_strided_slice %34 {offsets = [0, 0, 64], sizes = [1, 8, 64], strides = [1, 1, 1]} : vector<1x8x128xf32> to vector<1x8x64xf32>
    %37 = tpu.concatenate %35, %36 in 0 : vector<1x8x64xf32>, vector<1x8x64xf32> -> vector<2x8x64xf32>
    %38 = arith.truncf %37 : vector<2x8x64xf32> to vector<2x8x64xbf16>
    %39 = vector.extract_strided_slice %32 {offsets = [0, 128], sizes = [8, 128], strides = [1, 1]} : vector<8x384xf32> to vector<8x128xf32>
    %40 = vector.shape_cast %39 : vector<8x128xf32> to vector<1x8x128xf32>
    %41 = vector.extract_strided_slice %40 {offsets = [0, 0, 0], sizes = [1, 8, 64], strides = [1, 1, 1]} : vector<1x8x128xf32> to vector<1x8x64xf32>
    %42 = vector.extract_strided_slice %40 {offsets = [0, 0, 64], sizes = [1, 8, 64], strides = [1, 1, 1]} : vector<1x8x128xf32> to vector<1x8x64xf32>
    %43 = tpu.concatenate %41, %42 in 0 : vector<1x8x64xf32>, vector<1x8x64xf32> -> vector<2x8x64xf32>
    %44 = arith.truncf %43 : vector<2x8x64xf32> to vector<2x8x64xbf16>
    %45 = vector.extract_strided_slice %32 {offsets = [0, 256], sizes = [8, 128], strides = [1, 1]} : vector<8x384xf32> to vector<8x128xf32>
    %46 = vector.shape_cast %45 : vector<8x128xf32> to vector<1x8x128xf32>
    %47 = vector.extract_strided_slice %46 {offsets = [0, 0, 0], sizes = [1, 8, 64], strides = [1, 1, 1]} : vector<1x8x128xf32> to vector<1x8x64xf32>
    %48 = vector.extract_strided_slice %46 {offsets = [0, 0, 64], sizes = [1, 8, 64], strides = [1, 1, 1]} : vector<1x8x128xf32> to vector<1x8x64xf32>
    %49 = tpu.concatenate %47, %48 in 0 : vector<1x8x64xf32>, vector<1x8x64xf32> -> vector<2x8x64xf32>
    %50 = arith.truncf %49 : vector<2x8x64xf32> to vector<2x8x64xbf16>
    "tpu.trace_start"() <{level = 10 : i32, message = "bqd,bkd->bqk"}> : () -> ()
    %cst_15 = arith.constant dense<0.000000e+00> : vector<2x8x8xf32>
    %51 = tpu.matmul %38, %44, %cst_15 {dimension_numbers = #tpu.dot_dimension_numbers<[2], [2], [1], [1], [0, 0, 0, 1, 1, 1], [0], [0]>} : vector<2x8x64xbf16>, vector<2x8x64xbf16>, vector<2x8x8xf32> -> vector<2x8x8xf32>
    "tpu.trace_stop"() : () -> ()
    %cst_16 = arith.constant dense<0xFF800000> : vector<2x8xf32>
    %52 = vector.multi_reduction <maximumf>, %51, %cst_16 [2] : vector<2x8x8xf32> to vector<2x8xf32>
    %53 = vector.shape_cast %52 : vector<2x8xf32> to vector<2x8x1xf32>
    %54 = vector.broadcast %53 : vector<2x8x1xf32> to vector<2x8x8xf32>
    %55 = arith.subf %51, %54 : vector<2x8x8xf32>
    %56 = math.exp %55 : vector<2x8x8xf32>
    %cst_17 = arith.constant dense<0.000000e+00> : vector<2x8xf32>
    %57 = vector.multi_reduction <add>, %56, %cst_17 [2] : vector<2x8x8xf32> to vector<2x8xf32>
    %58 = vector.shape_cast %57 : vector<2x8xf32> to vector<2x8x1xf32>
    %59 = tpu.reciprocal %58 {approx = true} : vector<2x8x1xf32> -> vector<2x8x1xf32>
    %60 = vector.broadcast %59 : vector<2x8x1xf32> to vector<2x8x8xf32>
    %61 = arith.mulf %56, %60 : vector<2x8x8xf32>
    %62 = arith.truncf %61 : vector<2x8x8xf32> to vector<2x8x8xbf16>
    "tpu.trace_start"() <{level = 10 : i32, message = "bqk,bkd->bqd"}> : () -> ()
    %cst_18 = arith.constant dense<0.000000e+00> : vector<2x8x64xf32>
    %63 = tpu.matmul %62, %50, %cst_18 {dimension_numbers = #tpu.dot_dimension_numbers<[2], [1], [1], [2], [0, 0, 0, 1, 1, 2], [0], [0]>} : vector<2x8x8xbf16>, vector<2x8x64xbf16>, vector<2x8x64xf32> -> vector<2x8x64xf32>
    "tpu.trace_stop"() : () -> ()
    %64 = vector.extract_strided_slice %63 {offsets = [0, 0, 0], sizes = [1, 8, 64], strides = [1, 1, 1]} : vector<2x8x64xf32> to vector<1x8x64xf32>
    %65 = vector.extract_strided_slice %63 {offsets = [1, 0, 0], sizes = [1, 8, 64], strides = [1, 1, 1]} : vector<2x8x64xf32> to vector<1x8x64xf32>
    %66 = tpu.concatenate %64, %65 in 2 : vector<1x8x64xf32>, vector<1x8x64xf32> -> vector<1x8x128xf32>
    %67 = vector.shape_cast %66 : vector<1x8x128xf32> to vector<8x128xf32>
    %68 = arith.truncf %67 : vector<8x128xf32> to vector<8x128xbf16>
    %c0_19 = arith.constant 0 : index
    %c0_20 = arith.constant 0 : index
    %69 = vector.load %arg6[%c0_19, %c0_20] : memref<128x128xbf16, #tpu.memory_space<vmem>>, vector<128x128xbf16>
    %cst_21 = arith.constant dense<0.000000e+00> : vector<8x128xf32>
    %70 = tpu.matmul %68, %69, %cst_21 {dimension_numbers = #tpu.dot_dimension_numbers<[1], [0], [0], [1], [0, 0, 1, 1], [], []>} : vector<8x128xbf16>, vector<128x128xbf16>, vector<8x128xf32> -> vector<8x128xf32>
    %c0_22 = arith.constant 0 : index
    %c0_23 = arith.constant 0 : index
    %71 = vector.load %arg7[%c0_22, %c0_23] : memref<1x128xf32, #tpu.memory_space<vmem>>, vector<1x128xf32>
    %72 = vector.broadcast %71 : vector<1x128xf32> to vector<8x128xf32>
    %73 = arith.addf %70, %72 : vector<8x128xf32>
    %74 = arith.addf %73, %26 : vector<8x128xf32>
    %c0_24 = arith.constant 0 : index
    %c0_25 = arith.constant 0 : index
    %75 = vector.load %arg8[%c0_24, %c0_25] : memref<1x128xf32, #tpu.memory_space<vmem>>, vector<1x128xf32>
    %c0_26 = arith.constant 0 : index
    %c0_27 = arith.constant 0 : index
    %76 = vector.load %arg9[%c0_26, %c0_27] : memref<1x128xf32, #tpu.memory_space<vmem>>, vector<1x128xf32>
    %cst_28 = arith.constant dense<0.000000e+00> : vector<8xf32>
    %77 = vector.multi_reduction <add>, %74, %cst_28 [1] : vector<8x128xf32> to vector<8xf32>
    %78 = vector.shape_cast %77 : vector<8xf32> to vector<8x1xf32>
    %cst_29 = arith.constant 1.280000e+02 : f32
    %79 = vector.broadcast %cst_29 : f32 to vector<8x1xf32>
    %80 = arith.divf %78, %79 : vector<8x1xf32>
    %81 = vector.broadcast %80 : vector<8x1xf32> to vector<8x128xf32>
    %82 = arith.subf %74, %81 : vector<8x128xf32>
    %83 = arith.mulf %82, %82 : vector<8x128xf32>
    %cst_30 = arith.constant dense<0.000000e+00> : vector<8xf32>
    %84 = vector.multi_reduction <add>, %83, %cst_30 [1] : vector<8x128xf32> to vector<8xf32>
    %85 = vector.shape_cast %84 : vector<8xf32> to vector<8x1xf32>
    %cst_31 = arith.constant 1.280000e+02 : f32
    %86 = vector.broadcast %cst_31 : f32 to vector<8x1xf32>
    %87 = arith.divf %85, %86 : vector<8x1xf32>
    %cst_32 = arith.constant 9.99999996E-13 : f32
    %88 = vector.broadcast %cst_32 : f32 to vector<8x1xf32>
    %89 = arith.addf %87, %88 : vector<8x1xf32>
    %90 = math.rsqrt %89 : vector<8x1xf32>
    %91 = vector.broadcast %90 : vector<8x1xf32> to vector<8x128xf32>
    %92 = arith.mulf %82, %91 : vector<8x128xf32>
    %93 = vector.broadcast %75 : vector<1x128xf32> to vector<8x128xf32>
    %94 = arith.mulf %92, %93 : vector<8x128xf32>
    %95 = vector.broadcast %76 : vector<1x128xf32> to vector<8x128xf32>
    %96 = arith.addf %94, %95 : vector<8x128xf32>
    %97 = arith.truncf %96 : vector<8x128xf32> to vector<8x128xbf16>
    %c0_33 = arith.constant 0 : index
    %c0_34 = arith.constant 0 : index
    %98 = vector.load %arg10[%c0_33, %c0_34] : memref<128x256xbf16, #tpu.memory_space<vmem>>, vector<128x256xbf16>
    %cst_35 = arith.constant dense<0.000000e+00> : vector<8x256xf32>
    %99 = tpu.matmul %97, %98, %cst_35 {dimension_numbers = #tpu.dot_dimension_numbers<[1], [0], [0], [1], [0, 0, 1, 1], [], []>} : vector<8x128xbf16>, vector<128x256xbf16>, vector<8x256xf32> -> vector<8x256xf32>
    %c0_36 = arith.constant 0 : index
    %c0_37 = arith.constant 0 : index
    %100 = vector.load %arg11[%c0_36, %c0_37] : memref<1x256xf32, #tpu.memory_space<vmem>>, vector<1x256xf32>
    %101 = vector.broadcast %100 : vector<1x256xf32> to vector<8x256xf32>
    %102 = arith.addf %99, %101 : vector<8x256xf32>
    %cst_38 = arith.constant 5.000000e-01 : f32
    %103 = vector.broadcast %cst_38 : f32 to vector<8x256xf32>
    %104 = arith.mulf %103, %102 : vector<8x256xf32>
    %cst_39 = arith.constant 4.471500e-02 : f32
    %105 = vector.broadcast %cst_39 : f32 to vector<8x256xf32>
    %106 = arith.mulf %105, %102 : vector<8x256xf32>
    %107 = arith.mulf %106, %102 : vector<8x256xf32>
    %108 = arith.mulf %107, %102 : vector<8x256xf32>
    %109 = arith.addf %102, %108 : vector<8x256xf32>
    %cst_40 = arith.constant 0.797884583 : f32
    %110 = vector.broadcast %cst_40 : f32 to vector<8x256xf32>
    %111 = arith.mulf %110, %109 : vector<8x256xf32>
    %112 = math.tanh %111 : vector<8x256xf32>
    %cst_41 = arith.constant 1.000000e+00 : f32
    %113 = vector.broadcast %cst_41 : f32 to vector<8x256xf32>
    %114 = arith.addf %113, %112 : vector<8x256xf32>
    %115 = arith.mulf %104, %114 : vector<8x256xf32>
    %116 = arith.truncf %115 : vector<8x256xf32> to vector<8x256xbf16>
    %c0_42 = arith.constant 0 : index
    %c0_43 = arith.constant 0 : index
    %117 = vector.load %arg12[%c0_42, %c0_43] : memref<256x128xbf16, #tpu.memory_space<vmem>>, vector<256x128xbf16>
    %cst_44 = arith.constant dense<0.000000e+00> : vector<8x128xf32>
    %118 = tpu.matmul %116, %117, %cst_44 {dimension_numbers = #tpu.dot_dimension_numbers<[1], [0], [0], [1], [0, 0, 1, 1], [], []>} : vector<8x256xbf16>, vector<256x128xbf16>, vector<8x128xf32> -> vector<8x128xf32>
    %c0_45 = arith.constant 0 : index
    %c0_46 = arith.constant 0 : index
    %119 = vector.load %arg13[%c0_45, %c0_46] : memref<1x128xf32, #tpu.memory_space<vmem>>, vector<1x128xf32>
    %120 = vector.broadcast %119 : vector<1x128xf32> to vector<8x128xf32>
    %121 = arith.addf %118, %120 : vector<8x128xf32>
    %122 = arith.addf %121, %96 : vector<8x128xf32>
    %c0_47 = arith.constant 0 : index
    %c0_48 = arith.constant 0 : index
    %123 = vector.load %arg14[%c0_47, %c0_48] : memref<1x128xf32, #tpu.memory_space<vmem>>, vector<1x128xf32>
    %c0_49 = arith.constant 0 : index
    %c0_50 = arith.constant 0 : index
    %124 = vector.load %arg15[%c0_49, %c0_50] : memref<1x128xf32, #tpu.memory_space<vmem>>, vector<1x128xf32>
    %cst_51 = arith.constant dense<0.000000e+00> : vector<8xf32>
    %125 = vector.multi_reduction <add>, %122, %cst_51 [1] : vector<8x128xf32> to vector<8xf32>
    %126 = vector.shape_cast %125 : vector<8xf32> to vector<8x1xf32>
    %cst_52 = arith.constant 1.280000e+02 : f32
    %127 = vector.broadcast %cst_52 : f32 to vector<8x1xf32>
    %128 = arith.divf %126, %127 : vector<8x1xf32>
    %129 = vector.broadcast %128 : vector<8x1xf32> to vector<8x128xf32>
    %130 = arith.subf %122, %129 : vector<8x128xf32>
    %131 = arith.mulf %130, %130 : vector<8x128xf32>
    %cst_53 = arith.constant dense<0.000000e+00> : vector<8xf32>
    %132 = vector.multi_reduction <add>, %131, %cst_53 [1] : vector<8x128xf32> to vector<8xf32>
    %133 = vector.shape_cast %132 : vector<8xf32> to vector<8x1xf32>
    %cst_54 = arith.constant 1.280000e+02 : f32
    %134 = vector.broadcast %cst_54 : f32 to vector<8x1xf32>
    %135 = arith.divf %133, %134 : vector<8x1xf32>
    %cst_55 = arith.constant 9.99999996E-13 : f32
    %136 = vector.broadcast %cst_55 : f32 to vector<8x1xf32>
    %137 = arith.addf %135, %136 : vector<8x1xf32>
    %138 = math.rsqrt %137 : vector<8x1xf32>
    %139 = vector.broadcast %138 : vector<8x1xf32> to vector<8x128xf32>
    %140 = arith.mulf %130, %139 : vector<8x128xf32>
    %141 = vector.broadcast %123 : vector<1x128xf32> to vector<8x128xf32>
    %142 = arith.mulf %140, %141 : vector<8x128xf32>
    %143 = vector.broadcast %124 : vector<1x128xf32> to vector<8x128xf32>
    %144 = arith.addf %142, %143 : vector<8x128xf32>
    %145 = vector.shape_cast %144 : vector<8x128xf32> to vector<1x8x128xf32>
    %146 = arith.truncf %145 : vector<1x8x128xf32> to vector<1x8x128xbf16>
    %c0_56 = arith.constant 0 : index
    %c0_57 = arith.constant 0 : index
    %c0_58 = arith.constant 0 : index
    %147 = vector.load %arg16[%c0_56, %c0_57, %c0_58] : memref<1x8x128xbf16, #tpu.memory_space<vmem>>, vector<1x8x128xbf16>
    tpu.vector_store %arg16[%c0_56, %c0_57, %c0_58], %146 {strides = array<i32>} : memref<1x8x128xbf16, #tpu.memory_space<vmem>>, vector<1x8x128xbf16>,
    return
  }
  func.func @transform_0(%arg0: i32) -> (i32, i32, i32) {
    %c0_i32 = arith.constant 0 : i32
    %c0_i32_0 = arith.constant 0 : i32
    %c0_i32_1 = arith.constant 0 : i32
    return %arg0, %c0_i32, %c0_i32_0 : i32, i32, i32
  }
  func.func @transform_1(%arg0: i32) -> (i32, i32) {
    %c0_i32 = arith.constant 0 : i32
    %c0_i32_0 = arith.constant 0 : i32
    %c0_i32_1 = arith.constant 0 : i32
    return %c0_i32, %c0_i32_0 : i32, i32
  }
  func.func @transform_2(%arg0: i32) -> (i32, i32) {
    %c0_i32 = arith.constant 0 : i32
    %c0_i32_0 = arith.constant 0 : i32
    %c0_i32_1 = arith.constant 0 : i32
    return %c0_i32, %c0_i32_0 : i32, i32
  }
  func.func @transform_3(%arg0: i32) -> (i32, i32) {
    %c0_i32 = arith.constant 0 : i32
    %c0_i32_0 = arith.constant 0 : i32
    %c0_i32_1 = arith.constant 0 : i32
    return %c0_i32, %c0_i32_0 : i32, i32
  }
  func.func @transform_4(%arg0: i32) -> (i32, i32) {
    %c0_i32 = arith.constant 0 : i32
    %c0_i32_0 = arith.constant 0 : i32
    %c0_i32_1 = arith.constant 0 : i32
    return %c0_i32, %c0_i32_0 : i32, i32
  }
  func.func @transform_5(%arg0: i32) -> (i32, i32) {
    %c0_i32 = arith.constant 0 : i32
    %c0_i32_0 = arith.constant 0 : i32
    %c0_i32_1 = arith.constant 0 : i32
    return %c0_i32, %c0_i32_0 : i32, i32
  }
  func.func @transform_6(%arg0: i32) -> (i32, i32) {
    %c0_i32 = arith.constant 0 : i32
    %c0_i32_0 = arith.constant 0 : i32
    %c0_i32_1 = arith.constant 0 : i32
    return %c0_i32, %c0_i32_0 : i32, i32
  }
  func.func @transform_7(%arg0: i32) -> (i32, i32) {
    %c0_i32 = arith.constant 0 : i32
    %c0_i32_0 = arith.constant 0 : i32
    %c0_i32_1 = arith.constant 0 : i32
    return %c0_i32, %c0_i32_0 : i32, i32
  }
  func.func @transform_8(%arg0: i32) -> (i32, i32) {
    %c0_i32 = arith.constant 0 : i32
    %c0_i32_0 = arith.constant 0 : i32
    %c0_i32_1 = arith.constant 0 : i32
    return %c0_i32, %c0_i32_0 : i32, i32
  }
  func.func @transform_9(%arg0: i32) -> (i32, i32) {
    %c0_i32 = arith.constant 0 : i32
    %c0_i32_0 = arith.constant 0 : i32
    %c0_i32_1 = arith.constant 0 : i32
    return %c0_i32, %c0_i32_0 : i32, i32
  }
  func.func @transform_10(%arg0: i32) -> (i32, i32) {
    %c0_i32 = arith.constant 0 : i32
    %c0_i32_0 = arith.constant 0 : i32
    %c0_i32_1 = arith.constant 0 : i32
    return %c0_i32, %c0_i32_0 : i32, i32
  }
  func.func @transform_11(%arg0: i32) -> (i32, i32) {
    %c0_i32 = arith.constant 0 : i32
    %c0_i32_0 = arith.constant 0 : i32
    %c0_i32_1 = arith.constant 0 : i32
    return %c0_i32, %c0_i32_0 : i32, i32
  }
  func.func @transform_12(%arg0: i32) -> (i32, i32) {
    %c0_i32 = arith.constant 0 : i32
    %c0_i32_0 = arith.constant 0 : i32
    %c0_i32_1 = arith.constant 0 : i32
    return %c0_i32, %c0_i32_0 : i32, i32
  }
  func.func @transform_13(%arg0: i32) -> (i32, i32) {
    %c0_i32 = arith.constant 0 : i32
    %c0_i32_0 = arith.constant 0 : i32
    %c0_i32_1 = arith.constant 0 : i32
    return %c0_i32, %c0_i32_0 : i32, i32
  }
  func.func @transform_14(%arg0: i32) -> (i32, i32) {
    %c0_i32 = arith.constant 0 : i32
    %c0_i32_0 = arith.constant 0 : i32
    %c0_i32_1 = arith.constant 0 : i32
    return %c0_i32, %c0_i32_0 : i32, i32
  }
  func.func @transform_15(%arg0: i32) -> (i32, i32, i32) {
    %c0_i32 = arith.constant 0 : i32
    %c0_i32_0 = arith.constant 0 : i32
    %c0_i32_1 = arith.constant 0 : i32
    return %arg0, %c0_i32, %c0_i32_0 : i32, i32, i32
  }
}

</mosaic_0001>

<llo_original>
// kernel: tpu_custom_call.1
$region0: #{tpu_custom_call.1}
  #allocation0 [shape = 'u32[]', space=smem, size = 0x4, offset = 0x4, fixed_abs, tag = 'smem constant byte address 0x4 - core index']
  #allocation1 [shape = 'u32[144,128]{1,0:T(1,128)}', space=vmem, size = 0x12000, scoped, tag = 'internal scratch']
  %s0 = inlined_call_operand.hbm [shape: bf16[2,8,128], index: 0, kind: input, shape index: {}]
  %s1 = inlined_call_operand.vmem [shape: f32[1,128], index: 1, kind: input, shape index: {}]
  %s2 = inlined_call_operand.vmem [shape: f32[1,128], index: 2, kind: input, shape index: {}]
  %s3 = inlined_call_operand.hbm [shape: bf16[128,384], index: 3, kind: input, shape index: {}]
  %s4 = inlined_call_operand.vmem [shape: f32[1,384], index: 4, kind: input, shape index: {}]
  %s5 = inlined_call_operand.hbm [shape: bf16[128,128], index: 5, kind: input, shape index: {}]
  %s6 = inlined_call_operand.vmem [shape: f32[1,128], index: 6, kind: input, shape index: {}]
  %s7 = inlined_call_operand.vmem [shape: f32[1,128], index: 7, kind: input, shape index: {}]
  %s8 = inlined_call_operand.vmem [shape: f32[1,128], index: 8, kind: input, shape index: {}]
  %s9 = inlined_call_operand.hbm [shape: bf16[128,256], index: 9, kind: input, shape index: {}]
  %s10 = inlined_call_operand.vmem [shape: f32[1,256], index: 10, kind: input, shape index: {}]
  %s11 = inlined_call_operand.hbm [shape: bf16[256,128], index: 11, kind: input, shape index: {}]
  %s12 = inlined_call_operand.vmem [shape: f32[1,128], index: 12, kind: input, shape index: {}]
  %s13 = inlined_call_operand.vmem [shape: f32[1,128], index: 13, kind: input, shape index: {}]
  %s14 = inlined_call_operand.vmem [shape: f32[1,128], index: 14, kind: input, shape index: {}]
  %s15 = inlined_call_operand.hbm [shape: bf16[2,8,128], index: 15, kind: output, shape index: {}]
  %s16 = sld [smem:[#allocation0]]
  $region113: #{tpu_custom_call.1} parent=0
    _
  %s18 = ssub.s32 1, %s16
  %s19 = scalar_select 0, %s18, %s16
  $region1: #{tpu_custom_call.1} parent=0
    #allocation2 [shape = 'u8[4096]{0}', space=vmem, size = 0x1000, scoped, tag = 'input window, operand 0']
    #allocation3 [shape = 's32[2]{0}', space=sflag, size = 0x8, scoped, tag = 'scoped memory for tpu_custom_call.1']
    #allocation4 [shape = 's32[2]{0}', space=sflag, size = 0x8, scoped, tag = 'scoped memory for tpu_custom_call.1']
    #allocation5 [shape = 'u8[98304]{0}', space=vmem, size = 0x18000, scoped, tag = 'input window, operand 3, single buffered']
    #allocation6 [shape = 's32[1]{0}', space=sflag, size = 0x4, scoped, tag = 'scoped memory for tpu_custom_call.1']
    #allocation7 [shape = 'u8[32768]{0}', space=vmem, size = 0x8000, scoped, tag = 'input window, operand 5, single buffered']
    #allocation8 [shape = 'u8[65536]{0}', space=vmem, size = 0x10000, scoped, tag = 'input window, operand 9, single buffered']
    #allocation9 [shape = 's32[1]{0}', space=sflag, size = 0x4, scoped, tag = 'scoped memory for tpu_custom_call.1']
    #allocation10 [shape = 'u8[65536]{0}', space=vmem, size = 0x10000, scoped, tag = 'input window, operand 11, single buffered']
    #allocation11 [shape = 'u8[4096]{0}', space=vmem, size = 0x1000, scoped, tag = 'output window, operand 0']
    %20 = vsyncpa [#allocation3], 0
    %s21 = scalar_lea.sflag [#allocation3], 1
    %22 = vsyncpa %s21, 0
    %23 = vsyncpa [#allocation6], 0
    %24 = vsyncpa [#allocation9], 0
    %25 = vsyncpa [#allocation4], 0
    %s26 = scalar_lea.sflag [#allocation4], 1
    %27 = vsyncpa %s26, 0
    loop: start=0, step=1, limit=4
    $region2: #{tpu_custom_call.1} parent=1 // loop_pre_header
      _
    $region3: #{tpu_custom_call.1} parent=1 // loop_header
      %s29 = sphi 0, %s33
      %p30 = scmp.ge.s32.totalorder %s29, 4
      %s39 = sphi 0, %s41
      %s42 = sphi 0, %s39
      %s43 = sphi 0, %s42
      %s59 = sphi 0, %s43
      %s63 = sphi 0, %s63
      %s65 = sphi 0, %s63
      %s66 = sphi 0, %s65
      %s80 = sphi 0, %s66
      %s84 = sphi 0, %s84
      %s86 = sphi 0, %s84
      %s87 = sphi 0, %s86
      %s101 = sphi 0, %s87
      %s105 = sphi 0, %s105
      %s107 = sphi 0, %s105
      %s108 = sphi 0, %s107
      %s122 = sphi 0, %s108
      %s126 = sphi 0, %s126
      %s128 = sphi 0, %s126
      %s129 = sphi 0, %s128
      %s143 = sphi 0, %s129
      %s147 = sphi 0, %s147
      %s149 = sphi 0, %s147
      %s150 = sphi 0, %s149
      %s164 = sphi 0, %s150
      %s168 = sphi 0, %s168
      %s170 = sphi 0, %s168
      %s171 = sphi 0, %s170
      %s185 = sphi 0, %s171
      %s189 = sphi 0, %s189
      %s191 = sphi 0, %s189
      %s192 = sphi 0, %s191
      %s206 = sphi 0, %s192
      %s210 = sphi 0, %s210
      %s212 = sphi 0, %s210
      %s213 = sphi 0, %s212
      %s227 = sphi 0, %s213
      %s231 = sphi 0, %s231
      %s233 = sphi 0, %s231
      %s234 = sphi 0, %s233
      %s248 = sphi 0, %s234
      %s252 = sphi 0, %s252
      %s254 = sphi 0, %s252
      %s255 = sphi 0, %s254
      %s269 = sphi 0, %s255
      %s273 = sphi 0, %s273
      %s275 = sphi 0, %s273
      %s276 = sphi 0, %s275
      %s290 = sphi 0, %s276
      %s294 = sphi 0, %s294
      %s296 = sphi 0, %s294
      %s297 = sphi 0, %s296
      %s311 = sphi 0, %s297
      %s315 = sphi 0, %s315
      %s317 = sphi 0, %s315
      %s318 = sphi 0, %s317
      %s332 = sphi 0, %s318
      %s336 = sphi 0, %s336
      %s338 = sphi 0, %s336
      %s339 = sphi 0, %s338
      %s353 = sphi 0, %s339
      %s359 = sphi 0, %s361
      %s362 = sphi 0, %s359
      %s363 = sphi 0, %s362
      %s379 = sphi 0, %s363
    $region4: #{tpu_custom_call.1} parent=1 // loop_header_branch
      %32 = sbr.rel (%p30) target = $region8
    $region5: #{tpu_custom_call.1} parent=1 // loop_body
      %s34 = ssub.s32 %s29, 1
      %s35 = ssub.s32 %s29, 2
      %s36 = sadd.s32 %s29, 1
      %s37 = ssub.s32 %s29, %s36
      %p38 = scmp.eq.s32.totalorder %s37, 0
      %s40 = sadd.s32 %s39, 1
      %s41 = scalar_select %p38, %s39, %s40
      %p44 = pneg %p38
      %p45 = scmp.eq.s32.totalorder %s29, 1
      %p46 = por %p44, %p45
      %p47 = scmp.ne.s32.totalorder %s39, %s42
      %p48 = scmp.eq.s32.totalorder %s29, 0
      %p49 = por %p47, %p48
      %p50 = scmp.ne.s32.totalorder %s39, %s42
      %p51 = scmp.eq.s32.totalorder %s34, 1
      %p52 = por %p50, %p51
      %p53 = scmp.ne.s32.totalorder %s42, %s43
      %p54 = scmp.eq.s32.totalorder %s34, 0
      %p55 = por %p53, %p54
      %p56 = scmp.ne.s32.totalorder %s42, %s43
      %p57 = scmp.eq.s32.totalorder %s35, 1
      %p58 = por %p56, %p57
      %p60 = scmp.ne.s32.totalorder %s43, %s59
      %p61 = scmp.eq.s32.totalorder %s35, 0
      %p62 = por %p60, %p61
      %s64 = sadd.s32 %s63, 1
      %p67 = scmp.eq.s32.totalorder %s29, 1
      %p68 = scmp.ne.s32.totalorder %s63, %s65
      %p69 = scmp.eq.s32.totalorder %s29, 0
      %p70 = por %p68, %p69
      %p71 = scmp.ne.s32.totalorder %s63, %s65
      %p72 = scmp.eq.s32.totalorder %s34, 1
      %p73 = por %p71, %p72
      %p74 = scmp.ne.s32.totalorder %s65, %s66
      %p75 = scmp.eq.s32.totalorder %s34, 0
      %p76 = por %p74, %p75
      %p77 = scmp.ne.s32.totalorder %s65, %s66
      %p78 = scmp.eq.s32.totalorder %s35, 1
      %p79 = por %p77, %p78
      %p81 = scmp.ne.s32.totalorder %s66, %s80
      %p82 = scmp.eq.s32.totalorder %s35, 0
      %p83 = por %p81, %p82
      %s85 = sadd.s32 %s84, 1
      %p88 = scmp.eq.s32.totalorder %s29, 1
      %p89 = scmp.ne.s32.totalorder %s84, %s86
      %p90 = scmp.eq.s32.totalorder %s29, 0
      %p91 = por %p89, %p90
      %p92 = scmp.ne.s32.totalorder %s84, %s86
      %p93 = scmp.eq.s32.totalorder %s34, 1
      %p94 = por %p92, %p93
      %p95 = scmp.ne.s32.totalorder %s86, %s87
      %p96 = scmp.eq.s32.totalorder %s34, 0
      %p97 = por %p95, %p96
      %p98 = scmp.ne.s32.totalorder %s86, %s87
      %p99 = scmp.eq.s32.totalorder %s35, 1
      %p100 = por %p98, %p99
      %p102 = scmp.ne.s32.totalorder %s87, %s101
      %p103 = scmp.eq.s32.totalorder %s35, 0
      %p104 = por %p102, %p103
      %s106 = sadd.s32 %s105, 1
      %p109 = scmp.eq.s32.totalorder %s29, 1
      %p110 = scmp.ne.s32.totalorder %s105, %s107
      %p111 = scmp.eq.s32.totalorder %s29, 0
      %p112 = por %p110, %p111
      %p113 = scmp.ne.s32.totalorder %s105, %s107
      %p114 = scmp.eq.s32.totalorder %s34, 1
      %p115 = por %p113, %p114
      %p116 = scmp.ne.s32.totalorder %s107, %s108
      %p117 = scmp.eq.s32.totalorder %s34, 0
      %p118 = por %p116, %p117
      %p119 = scmp.ne.s32.totalorder %s107, %s108
      %p120 = scmp.eq.s32.totalorder %s35, 1
      %p121 = por %p119, %p120
      %p123 = scmp.ne.s32.totalorder %s108, %s122
      %p124 = scmp.eq.s32.totalorder %s35, 0
      %p125 = por %p123, %p124
      %s127 = sadd.s32 %s126, 1
      %p130 = scmp.eq.s32.totalorder %s29, 1
      %p131 = scmp.ne.s32.totalorder %s126, %s128
      %p132 = scmp.eq.s32.totalorder %s29, 0
      %p133 = por %p131, %p132
      %p134 = scmp.ne.s32.totalorder %s126, %s128
      %p135 = scmp.eq.s32.totalorder %s34, 1
      %p136 = por %p134, %p135
      %p137 = scmp.ne.s32.totalorder %s128, %s129
      %p138 = scmp.eq.s32.totalorder %s34, 0
      %p139 = por %p137, %p138
      %p140 = scmp.ne.s32.totalorder %s128, %s129
      %p141 = scmp.eq.s32.totalorder %s35, 1
      %p142 = por %p140, %p141
      %p144 = scmp.ne.s32.totalorder %s129, %s143
      %p145 = scmp.eq.s32.totalorder %s35, 0
      %p146 = por %p144, %p145
      %s148 = sadd.s32 %s147, 1
      %p151 = scmp.eq.s32.totalorder %s29, 1
      %p152 = scmp.ne.s32.totalorder %s147, %s149
      %p153 = scmp.eq.s32.totalorder %s29, 0
      %p154 = por %p152, %p153
      %p155 = scmp.ne.s32.totalorder %s147, %s149
      %p156 = scmp.eq.s32.totalorder %s34, 1
      %p157 = por %p155, %p156
      %p158 = scmp.ne.s32.totalorder %s149, %s150
      %p159 = scmp.eq.s32.totalorder %s34, 0
      %p160 = por %p158, %p159
      %p161 = scmp.ne.s32.totalorder %s149, %s150
      %p162 = scmp.eq.s32.totalorder %s35, 1
      %p163 = por %p161, %p162
      %p165 = scmp.ne.s32.totalorder %s150, %s164
      %p166 = scmp.eq.s32.totalorder %s35, 0
      %p167 = por %p165, %p166
      %s169 = sadd.s32 %s168, 1
      %p172 = scmp.eq.s32.totalorder %s29, 1
      %p173 = scmp.ne.s32.totalorder %s168, %s170
      %p174 = scmp.eq.s32.totalorder %s29, 0
      %p175 = por %p173, %p174
      %p176 = scmp.ne.s32.totalorder %s168, %s170
      %p177 = scmp.eq.s32.totalorder %s34, 1
      %p178 = por %p176, %p177
      %p179 = scmp.ne.s32.totalorder %s170, %s171
      %p180 = scmp.eq.s32.totalorder %s34, 0
      %p181 = por %p179, %p180
      %p182 = scmp.ne.s32.totalorder %s170, %s171
      %p183 = scmp.eq.s32.totalorder %s35, 1
      %p184 = por %p182, %p183
      %p186 = scmp.ne.s32.totalorder %s171, %s185
      %p187 = scmp.eq.s32.totalorder %s35, 0
      %p188 = por %p186, %p187
      %s190 = sadd.s32 %s189, 1
      %p193 = scmp.eq.s32.totalorder %s29, 1
      %p194 = scmp.ne.s32.totalorder %s189, %s191
      %p195 = scmp.eq.s32.totalorder %s29, 0
      %p196 = por %p194, %p195
      %p197 = scmp.ne.s32.totalorder %s189, %s191
      %p198 = scmp.eq.s32.totalorder %s34, 1
      %p199 = por %p197, %p198
      %p200 = scmp.ne.s32.totalorder %s191, %s192
      %p201 = scmp.eq.s32.totalorder %s34, 0
      %p202 = por %p200, %p201
      %p203 = scmp.ne.s32.totalorder %s191, %s192
      %p204 = scmp.eq.s32.totalorder %s35, 1
      %p205 = por %p203, %p204
      %p207 = scmp.ne.s32.totalorder %s192, %s206
      %p208 = scmp.eq.s32.totalorder %s35, 0
      %p209 = por %p207, %p208
      %s211 = sadd.s32 %s210, 1
      %p214 = scmp.eq.s32.totalorder %s29, 1
      %p215 = scmp.ne.s32.totalorder %s210, %s212
      %p216 = scmp.eq.s32.totalorder %s29, 0
      %p217 = por %p215, %p216
      %p218 = scmp.ne.s32.totalorder %s210, %s212
      %p219 = scmp.eq.s32.totalorder %s34, 1
      %p220 = por %p218, %p219
      %p221 = scmp.ne.s32.totalorder %s212, %s213
      %p222 = scmp.eq.s32.totalorder %s34, 0
      %p223 = por %p221, %p222
      %p224 = scmp.ne.s32.totalorder %s212, %s213
      %p225 = scmp.eq.s32.totalorder %s35, 1
      %p226 = por %p224, %p225
      %p228 = scmp.ne.s32.totalorder %s213, %s227
      %p229 = scmp.eq.s32.totalorder %s35, 0
      %p230 = por %p228, %p229
      %s232 = sadd.s32 %s231, 1
      %p235 = scmp.eq.s32.totalorder %s29, 1
      %p236 = scmp.ne.s32.totalorder %s231, %s233
      %p237 = scmp.eq.s32.totalorder %s29, 0
      %p238 = por %p236, %p237
      %p239 = scmp.ne.s32.totalorder %s231, %s233
      %p240 = scmp.eq.s32.totalorder %s34, 1
      %p241 = por %p239, %p240
      %p242 = scmp.ne.s32.totalorder %s233, %s234
      %p243 = scmp.eq.s32.totalorder %s34, 0
      %p244 = por %p242, %p243
      %p245 = scmp.ne.s32.totalorder %s233, %s234
      %p246 = scmp.eq.s32.totalorder %s35, 1
      %p247 = por %p245, %p246
      %p249 = scmp.ne.s32.totalorder %s234, %s248
      %p250 = scmp.eq.s32.totalorder %s35, 0
      %p251 = por %p249, %p250
      %s253 = sadd.s32 %s252, 1
      %p256 = scmp.eq.s32.totalorder %s29, 1
      %p257 = scmp.ne.s32.totalorder %s252, %s254
      %p258 = scmp.eq.s32.totalorder %s29, 0
      %p259 = por %p257, %p258
      %p260 = scmp.ne.s32.totalorder %s252, %s254
      %p261 = scmp.eq.s32.totalorder %s34, 1
      %p262 = por %p260, %p261
      %p263 = scmp.ne.s32.totalorder %s254, %s255
      %p264 = scmp.eq.s32.totalorder %s34, 0
      %p265 = por %p263, %p264
      %p266 = scmp.ne.s32.totalorder %s254, %s255
      %p267 = scmp.eq.s32.totalorder %s35, 1
      %p268 = por %p266, %p267
      %p270 = scmp.ne.s32.totalorder %s255, %s269
      %p271 = scmp.eq.s32.totalorder %s35, 0
      %p272 = por %p270, %p271
      %s274 = sadd.s32 %s273, 1
      %p277 = scmp.eq.s32.totalorder %s29, 1
      %p278 = scmp.ne.s32.totalorder %s273, %s275
      %p279 = scmp.eq.s32.totalorder %s29, 0
      %p280 = por %p278, %p279
      %p281 = scmp.ne.s32.totalorder %s273, %s275
      %p282 = scmp.eq.s32.totalorder %s34, 1
      %p283 = por %p281, %p282
      %p284 = scmp.ne.s32.totalorder %s275, %s276
      %p285 = scmp.eq.s32.totalorder %s34, 0
      %p286 = por %p284, %p285
      %p287 = scmp.ne.s32.totalorder %s275, %s276
      %p288 = scmp.eq.s32.totalorder %s35, 1
      %p289 = por %p287, %p288
      %p291 = scmp.ne.s32.totalorder %s276, %s290
      %p292 = scmp.eq.s32.totalorder %s35, 0
      %p293 = por %p291, %p292
      %s295 = sadd.s32 %s294, 1
      %p298 = scmp.eq.s32.totalorder %s29, 1
      %p299 = scmp.ne.s32.totalorder %s294, %s296
      %p300 = scmp.eq.s32.totalorder %s29, 0
      %p301 = por %p299, %p300
      %p302 = scmp.ne.s32.totalorder %s294, %s296
      %p303 = scmp.eq.s32.totalorder %s34, 1
      %p304 = por %p302, %p303
      %p305 = scmp.ne.s32.totalorder %s296, %s297
      %p306 = scmp.eq.s32.totalorder %s34, 0
      %p307 = por %p305, %p306
      %p308 = scmp.ne.s32.totalorder %s296, %s297
      %p309 = scmp.eq.s32.totalorder %s35, 1
      %p310 = por %p308, %p309
      %p312 = scmp.ne.s32.totalorder %s297, %s311
      %p313 = scmp.eq.s32.totalorder %s35, 0
      %p314 = por %p312, %p313
      %s316 = sadd.s32 %s315, 1
      %p319 = scmp.eq.s32.totalorder %s29, 1
      %p320 = scmp.ne.s32.totalorder %s315, %s317
      %p321 = scmp.eq.s32.totalorder %s29, 0
      %p322 = por %p320, %p321
      %p323 = scmp.ne.s32.totalorder %s315, %s317
      %p324 = scmp.eq.s32.totalorder %s34, 1
      %p325 = por %p323, %p324
      %p326 = scmp.ne.s32.totalorder %s317, %s318
      %p327 = scmp.eq.s32.totalorder %s34, 0
      %p328 = por %p326, %p327
      %p329 = scmp.ne.s32.totalorder %s317, %s318
      %p330 = scmp.eq.s32.totalorder %s35, 1
      %p331 = por %p329, %p330
      %p333 = scmp.ne.s32.totalorder %s318, %s332
      %p334 = scmp.eq.s32.totalorder %s35, 0
      %p335 = por %p333, %p334
      %s337 = sadd.s32 %s336, 1
      %p340 = scmp.eq.s32.totalorder %s29, 1
      %p341 = scmp.ne.s32.totalorder %s336, %s338
      %p342 = scmp.eq.s32.totalorder %s29, 0
      %p343 = por %p341, %p342
      %p344 = scmp.ne.s32.totalorder %s336, %s338
      %p345 = scmp.eq.s32.totalorder %s34, 1
      %p346 = por %p344, %p345
      %p347 = scmp.ne.s32.totalorder %s338, %s339
      %p348 = scmp.eq.s32.totalorder %s34, 0
      %p349 = por %p347, %p348
      %p350 = scmp.ne.s32.totalorder %s338, %s339
      %p351 = scmp.eq.s32.totalorder %s35, 1
      %p352 = por %p350, %p351
      %p354 = scmp.ne.s32.totalorder %s339, %s353
      %p355 = scmp.eq.s32.totalorder %s35, 0
      %p356 = por %p354, %p355
      %s357 = ssub.s32 %s29, %s36
      %p358 = scmp.eq.s32.totalorder %s357, 0
      %s360 = sadd.s32 %s359, 1
      %s361 = scalar_select %p358, %s359, %s360
      %p364 = pneg %p358
      %p365 = scmp.eq.s32.totalorder %s29, 1
      %p366 = por %p364, %p365
      %p367 = scmp.ne.s32.totalorder %s359, %s362
      %p368 = scmp.eq.s32.totalorder %s29, 0
      %p369 = por %p367, %p368
      %p370 = scmp.ne.s32.totalorder %s359, %s362
      %p371 = scmp.eq.s32.totalorder %s34, 1
      %p372 = por %p370, %p371
      %p373 = scmp.ne.s32.totalorder %s362, %s363
      %p374 = scmp.eq.s32.totalorder %s34, 0
      %p375 = por %p373, %p374
      %p376 = scmp.ne.s32.totalorder %s362, %s363
      %p377 = scmp.eq.s32.totalorder %s35, 1
      %p378 = por %p376, %p377
      %p380 = scmp.ne.s32.totalorder %s363, %s379
      %p381 = scmp.eq.s32.totalorder %s35, 0
      %p382 = por %p380, %p381
      %p383 = scmp.le.s32.totalorder 1, %s29
      %p384 = scmp.lt.s32.totalorder %s29, 3
      %p385 = pnand %p383, %p384
      %p386 = pneg %p385
      // Predicated region
      $region9: #{tpu_custom_call.1} parent=5 // pred_check
        _
      $region10: #{tpu_custom_call.1} parent=5 // pred_check_branch
        %388 = sbr.rel (%p385) target = $region12
      $region11: #{tpu_custom_call.1} parent=5 // pred_region
        %s389 = ssub.s32 %s29, 1
        // Predicated region
        $region13: #{tpu_custom_call.1} parent=11 // pred_check
          %p390 = pneg %p76
        $region14: #{tpu_custom_call.1} parent=11 // pred_check_branch
          %392 = sbr.rel (%p390) target = $region16
        $region15: #{tpu_custom_call.1} parent=11 // pred_region
          _
        $region16: #{tpu_custom_call.1} parent=11 // pred_fallthru
          _
        // Predicated region
        $region17: #{tpu_custom_call.1} parent=11 // pred_check
          %p393 = pneg %p97
        $region18: #{tpu_custom_call.1} parent=11 // pred_check_branch
          %395 = sbr.rel (%p393) target = $region20
        $region19: #{tpu_custom_call.1} parent=11 // pred_region
          _
        $region20: #{tpu_custom_call.1} parent=11 // pred_fallthru
          _
        // Predicated region
        $region21: #{tpu_custom_call.1} parent=11 // pred_check
          %p396 = pneg %p118
        $region22: #{tpu_custom_call.1} parent=11 // pred_check_branch
          %398 = sbr.rel (%p396) target = $region24
        $region23: #{tpu_custom_call.1} parent=11 // pred_region
          %s400 = ssub.s32 3072, 3072
          %401 = vsyncadd [#allocation6], %s400
          %s402 = sshll.u32 [#allocation5], 4
          %s403 = int_to_ptr.vmem [resolvable:$true] %s402
          %408 = dma.hbm_to_vmem [thread:$0]  %s3, 3072, %s403, [#allocation6], 192, 192, 12
        $region24: #{tpu_custom_call.1} parent=11 // pred_fallthru
          _
        // Predicated region
        $region25: #{tpu_custom_call.1} parent=11 // pred_check
          %p409 = pneg %p139
        $region26: #{tpu_custom_call.1} parent=11 // pred_check_branch
          %411 = sbr.rel (%p409) target = $region28
        $region27: #{tpu_custom_call.1} parent=11 // pred_region
          _
        $region28: #{tpu_custom_call.1} parent=11 // pred_fallthru
          _
        // Predicated region
        $region29: #{tpu_custom_call.1} parent=11 // pred_check
          %p412 = pneg %p160
        $region30: #{tpu_custom_call.1} parent=11 // pred_check_branch
          %414 = sbr.rel (%p412) target = $region32
        $region31: #{tpu_custom_call.1} parent=11 // pred_region
          %s416 = ssub.s32 1024, 1024
          %417 = vsyncadd [#allocation6], %s416
          %s418 = sshll.u32 [#allocation7], 4
          %s419 = int_to_ptr.vmem [resolvable:$true] %s418
          %424 = dma.hbm_to_vmem [thread:$0]  %s5, 1024, %s419, [#allocation6], 64, 64, 4
        $region32: #{tpu_custom_call.1} parent=11 // pred_fallthru
          _
        // Predicated region
        $region33: #{tpu_custom_call.1} parent=11 // pred_check
          %p425 = pneg %p181
        $region34: #{tpu_custom_call.1} parent=11 // pred_check_branch
          %427 = sbr.rel (%p425) target = $region36
        $region35: #{tpu_custom_call.1} parent=11 // pred_region
          _
        $region36: #{tpu_custom_call.1} parent=11 // pred_fallthru
          _
        // Predicated region
        $region37: #{tpu_custom_call.1} parent=11 // pred_check
          %p428 = pneg %p202
        $region38: #{tpu_custom_call.1} parent=11 // pred_check_branch
          %430 = sbr.rel (%p428) target = $region40
        $region39: #{tpu_custom_call.1} parent=11 // pred_region
          _
        $region40: #{tpu_custom_call.1} parent=11 // pred_fallthru
          _
        // Predicated region
        $region41: #{tpu_custom_call.1} parent=11 // pred_check
          %p431 = pneg %p223
        $region42: #{tpu_custom_call.1} parent=11 // pred_check_branch
          %433 = sbr.rel (%p431) target = $region44
        $region43: #{tpu_custom_call.1} parent=11 // pred_region
          _
        $region44: #{tpu_custom_call.1} parent=11 // pred_fallthru
          _
        // Predicated region
        $region45: #{tpu_custom_call.1} parent=11 // pred_check
          %p434 = pneg %p244
        $region46: #{tpu_custom_call.1} parent=11 // pred_check_branch
          %436 = sbr.rel (%p434) target = $region48
        $region47: #{tpu_custom_call.1} parent=11 // pred_region
          %s438 = ssub.s32 2048, 2048
          %439 = vsyncadd [#allocation9], %s438
          %s440 = sshll.u32 [#allocation8], 4
          %s441 = int_to_ptr.vmem [resolvable:$true] %s440
          %446 = dma.hbm_to_vmem [thread:$0]  %s9, 2048, %s441, [#allocation9], 128, 128, 8
        $region48: #{tpu_custom_call.1} parent=11 // pred_fallthru
          _
        // Predicated region
        $region49: #{tpu_custom_call.1} parent=11 // pred_check
          %p447 = pneg %p265
        $region50: #{tpu_custom_call.1} parent=11 // pred_check_branch
          %449 = sbr.rel (%p447) target = $region52
        $region51: #{tpu_custom_call.1} parent=11 // pred_region
          _
        $region52: #{tpu_custom_call.1} parent=11 // pred_fallthru
          _
        // Predicated region
        $region53: #{tpu_custom_call.1} parent=11 // pred_check
          %p450 = pneg %p286
        $region54: #{tpu_custom_call.1} parent=11 // pred_check_branch
          %452 = sbr.rel (%p450) target = $region56
        $region55: #{tpu_custom_call.1} parent=11 // pred_region
          %s454 = ssub.s32 2048, 2048
          %455 = vsyncadd [#allocation9], %s454
          %s456 = sshll.u32 [#allocation10], 4
          %s457 = int_to_ptr.vmem [resolvable:$true] %s456
          %462 = dma.hbm_to_vmem [thread:$0]  %s11, 2048, %s457, [#allocation9], 64, 64, 4
        $region56: #{tpu_custom_call.1} parent=11 // pred_fallthru
          _
        // Predicated region
        $region57: #{tpu_custom_call.1} parent=11 // pred_check
          %p463 = pneg %p307
        $region58: #{tpu_custom_call.1} parent=11 // pred_check_branch
          %465 = sbr.rel (%p463) target = $region60
        $region59: #{tpu_custom_call.1} parent=11 // pred_region
          _
        $region60: #{tpu_custom_call.1} parent=11 // pred_fallthru
          _
        // Predicated region
        $region61: #{tpu_custom_call.1} parent=11 // pred_check
          %p466 = pneg %p328
        $region62: #{tpu_custom_call.1} parent=11 // pred_check_branch
          %468 = sbr.rel (%p466) target = $region64
        $region63: #{tpu_custom_call.1} parent=11 // pred_region
          _
        $region64: #{tpu_custom_call.1} parent=11 // pred_fallthru
          _
        // Predicated region
        $region65: #{tpu_custom_call.1} parent=11 // pred_check
          %p469 = pneg %p349
        $region66: #{tpu_custom_call.1} parent=11 // pred_check_branch
          %471 = sbr.rel (%p469) target = $region68
        $region67: #{tpu_custom_call.1} parent=11 // pred_region
          _
        $region68: #{tpu_custom_call.1} parent=11 // pred_fallthru
          _
      $region12: #{tpu_custom_call.1} parent=5 // pred_fallthru
        _
      %p472 = scmp.lt.s32.totalorder %s29, 2
      // Predicated region
      $region69: #{tpu_custom_call.1} parent=5 // pred_check
        %p473 = pneg %p472
      $region70: #{tpu_custom_call.1} parent=5 // pred_check_branch
        %475 = sbr.rel (%p473) target = $region72
      $region71: #{tpu_custom_call.1} parent=5 // pred_region
        // Predicated region
        $region73: #{tpu_custom_call.1} parent=71 // pred_check
          %p476 = pneg %p49
        $region74: #{tpu_custom_call.1} parent=71 // pred_check_branch
          %478 = sbr.rel (%p476) target = $region76
        $region75: #{tpu_custom_call.1} parent=71 // pred_region
          %s479 = sand.u32 %s39, 1
          %s480 = scalar_lea.sflag [#allocation3], %s479
          %s481 = sand.u32 %s39, 1
          %s482 = smul.addr %s481, 4
          %s483 = scalar_lea.vmem [#allocation2], %s482
          %s485 = ssub.s32 64, 64
          %486 = vsyncadd %s480, %s485
          %s487 = smul.addr %s29, 64
          %s488 = scalar_lea.hbm %s0, %s487
          %s490 = sshll.u32 %s483, 4
          %s491 = int_to_ptr.vmem [resolvable:$true] %s490
          %493 = dma.hbm_to_vmem [thread:$0]  %s488, 64, %s491, %s480
        $region76: #{tpu_custom_call.1} parent=71 // pred_fallthru
          _
      $region72: #{tpu_custom_call.1} parent=5 // pred_fallthru
        _
      %p494 = scmp.le.s32.totalorder 1, %s29
      %p495 = scmp.lt.s32.totalorder %s29, 3
      %p496 = pnand %p494, %p495
      %p497 = pneg %p496
      // Predicated region
      $region77: #{tpu_custom_call.1} parent=5 // pred_check
        _
      $region78: #{tpu_custom_call.1} parent=5 // pred_check_branch
        %499 = sbr.rel (%p496) target = $region80
      $region79: #{tpu_custom_call.1} parent=5 // pred_region
        %s500 = ssub.s32 %s29, 1
        %s501 = sand.u32 %s42, 1
        %s502 = scalar_lea.sflag [#allocation3], %s501
        %s503 = sand.u32 %s42, 1
        %s504 = smul.addr %s503, 4
        %s505 = scalar_lea.vmem [#allocation2], %s504
        // Predicated region
        $region81: #{tpu_custom_call.1} parent=79 // pred_check
          %p506 = pneg %p55
        $region82: #{tpu_custom_call.1} parent=79 // pred_check_branch
          %508 = sbr.rel (%p506) target = $region84
        $region83: #{tpu_custom_call.1} parent=79 // pred_region
          %509 = dma.done %s502, 64
        $region84: #{tpu_custom_call.1} parent=79 // pred_fallthru
          _
        // Predicated region
        $region85: #{tpu_custom_call.1} parent=79 // pred_check
          %p510 = pneg %p118
        $region86: #{tpu_custom_call.1} parent=79 // pred_check_branch
          %512 = sbr.rel (%p510) target = $region88
        $region87: #{tpu_custom_call.1} parent=79 // pred_region
          %513 = dma.done [#allocation6], 3072
        $region88: #{tpu_custom_call.1} parent=79 // pred_fallthru
          _
        // Predicated region
        $region89: #{tpu_custom_call.1} parent=79 // pred_check
          %p514 = pneg %p160
        $region90: #{tpu_custom_call.1} parent=79 // pred_check_branch
          %516 = sbr.rel (%p514) target = $region92
        $region91: #{tpu_custom_call.1} parent=79 // pred_region
          %517 = dma.done [#allocation6], 1024
        $region92: #{tpu_custom_call.1} parent=79 // pred_fallthru
          _
        // Predicated region
        $region93: #{tpu_custom_call.1} parent=79 // pred_check
          %p518 = pneg %p244
        $region94: #{tpu_custom_call.1} parent=79 // pred_check_branch
          %520 = sbr.rel (%p518) target = $region96
        $region95: #{tpu_custom_call.1} parent=79 // pred_region
          %521 = dma.done [#allocation9], 2048
        $region96: #{tpu_custom_call.1} parent=79 // pred_fallthru
          _
        // Predicated region
        $region97: #{tpu_custom_call.1} parent=79 // pred_check
          %p522 = pneg %p286
        $region98: #{tpu_custom_call.1} parent=79 // pred_check_branch
          %524 = sbr.rel (%p522) target = $region100
        $region99: #{tpu_custom_call.1} parent=79 // pred_region
          %525 = dma.done [#allocation9], 2048
        $region100: #{tpu_custom_call.1} parent=79 // pred_fallthru
          _
        %s526 = sand.u32 %s42, 1
        %s527 = scalar_lea.sflag [#allocation3], %s526
        %s528 = sand.u32 %s42, 1
        %s529 = smul.addr %s528, 4
        %s530 = scalar_lea.vmem [#allocation2], %s529
        %p531 = pneg %p55
        %p532 = pneg %p52
        %p533 = pneg %p76
        %p534 = pneg %p73
        %p535 = pneg %p97
        %p536 = pneg %p94
        %p537 = pneg %p118
        %p538 = pneg %p115
        %p539 = pneg %p139
        %p540 = pneg %p136
        %p541 = pneg %p160
        %p542 = pneg %p157
        %p543 = pneg %p181
        %p544 = pneg %p178
        %p545 = pneg %p202
        %p546 = pneg %p199
        %p547 = pneg %p223
        %p548 = pneg %p220
        %p549 = pneg %p244
        %p550 = pneg %p241
        %p551 = pneg %p265
        %p552 = pneg %p262
        %p553 = pneg %p286
        %p554 = pneg %p283
        %p555 = pneg %p307
        %p556 = pneg %p304
        %p557 = pneg %p328
        %p558 = pneg %p325
        %p559 = pneg %p349
        %p560 = pneg %p346
        %p561 = pneg %p375
        %p562 = pneg %p372
        %s563 = sand.u32 %s362, 1
        %s564 = scalar_lea.sflag [#allocation4], %s563
        %s565 = sand.u32 %s362, 1
        %s566 = smul.addr %s565, 4
        %s567 = scalar_lea.vmem [#allocation11], %s566
        %v569 = vld [vmem:[%s505] sm:$0xf]
        %v570 = vunpack.c.l.bf16 %v569
        %v571 = vld [vmem:[%s1] sm:$0x1]
        %v572 = vld [vmem:[%s2] sm:$0x1]
        %573 = vadd.xlane.f32.xlu0 %v570
        %v574 = vpop.xlane.xlu0 %573
        %v575 = vrcp.pop 128.0
        %v576 = vmul.f32 %v574, %v575
        %v577 = vsub.f32 %v570, %v576
        %v578 = vmul.f32 %v577, %v577
        %579 = vadd.xlane.f32.xlu0 %v578
        %v580 = vpop.xlane.xlu0 %579
        %v581 = vmul.f32 %v580, %v575
        %v582 = vadd.f32 %v581, 1e-12
        %v583 = vrsqrt.pop %v582
        %v584 = vmul.f32 %v577, %v583
        %v586 = vlaneseq
        %v587 = vshrl.u32 %v586, 7
        %v588 = vsub.s32 0, %v587
        %v589 = vrot.slane %v571, %v588
        %v591 = vmul.f32 %v584, %v589
        %v593 = vlaneseq
        %v594 = vshrl.u32 %v593, 7
        %v595 = vsub.s32 0, %v594
        %v596 = vrot.slane %v572, %v595
        %v598 = vadd.f32 %v591, %v596
        %v599 = vpack.c.bf16 %v598, %v598
        %v600 = vld [vmem:[#allocation5] sm:$0xff]
        %v601 = vld [vmem:[#allocation5 + $0x8] sm:$0xf]
        %v602 = vld [vmem:[#allocation5 + $0xc] sm:$0xff]
        %v603 = vld [vmem:[#allocation5 + $0x14] sm:$0xf]
        %v604 = vld [vmem:[#allocation5 + $0x18] sm:$0xff]
        %v605 = vld [vmem:[#allocation5 + $0x20] sm:$0xf]
        %v606 = vld [vmem:[#allocation5 + $0x24] sm:$0xff]
        %v607 = vld [vmem:[#allocation5 + $0x2c] sm:$0xf]
        %v608 = vld [vmem:[#allocation5 + $0x30] sm:$0xff]
        %v609 = vld [vmem:[#allocation5 + $0x38] sm:$0xf]
        %v610 = vld [vmem:[#allocation5 + $0x3c] sm:$0xff]
        %v611 = vld [vmem:[#allocation5 + $0x44] sm:$0xf]
        %v612 = vld [vmem:[#allocation5 + $0x48] sm:$0xff]
        %v613 = vld [vmem:[#allocation5 + $0x50] sm:$0xf]
        %v614 = vld [vmem:[#allocation5 + $0x54] sm:$0xff]
        %v615 = vld [vmem:[#allocation5 + $0x5c] sm:$0xf]
        %v616 = vld [vmem:[#allocation5 + $0x60] sm:$0xff]
        %v617 = vld [vmem:[#allocation5 + $0x68] sm:$0xf]
        %v618 = vld [vmem:[#allocation5 + $0x6c] sm:$0xff]
        %v619 = vld [vmem:[#allocation5 + $0x74] sm:$0xf]
        %v620 = vld [vmem:[#allocation5 + $0x78] sm:$0xff]
        %v621 = vld [vmem:[#allocation5 + $0x80] sm:$0xf]
        %v622 = vld [vmem:[#allocation5 + $0x84] sm:$0xff]
        %v623 = vld [vmem:[#allocation5 + $0x8c] sm:$0xf]
        %v624 = vld [vmem:[#allocation5 + $0x90] sm:$0xff]
        %v625 = vld [vmem:[#allocation5 + $0x98] sm:$0xf]
        %v626 = vld [vmem:[#allocation5 + $0x9c] sm:$0xff]
        %v627 = vld [vmem:[#allocation5 + $0xa4] sm:$0xf]
        %v628 = vld [vmem:[#allocation5 + $0xa8] sm:$0xff]
        %v629 = vld [vmem:[#allocation5 + $0xb0] sm:$0xf]
        %v630 = vld [vmem:[#allocation5 + $0xb4] sm:$0xff]
        %v631 = vld [vmem:[#allocation5 + $0xbc] sm:$0xf]
        %v632 = vld [vmem:[%s4] sm:$0x7]
        %v634 = vlaneseq
        %v635 = vshrl.u32 %v634, 7
        %v636 = vsub.s32 0, %v635
        %v637 = vrot.slane %v632, %v636
        %v638 = vlaneseq
        %v639 = vshrl.u32 %v638, 7
        %v640 = vsub.s32 1, %v639
        %v641 = vrot.slane %v632, %v640
        %v642 = vlaneseq
        %v643 = vshrl.u32 %v642, 7
        %v644 = vsub.s32 2, %v643
        %v645 = vrot.slane %v632, %v644
        %v681 = vunpack.c.l.b16 %v600
        %v682 = vunpack.c.h.b16 %v600
        %v683 = vunpack.c.l.b16 %v601
        %v684 = vunpack.c.l.b16 %v602
        %v685 = vunpack.c.h.b16 %v602
        %v686 = vunpack.c.l.b16 %v603
        %v687 = vunpack.c.l.b16 %v604
        %v688 = vunpack.c.h.b16 %v604
        %v689 = vunpack.c.l.b16 %v605
        %v690 = vunpack.c.l.b16 %v606
        %v691 = vunpack.c.h.b16 %v606
        %v692 = vunpack.c.l.b16 %v607
        %v693 = vunpack.c.l.b16 %v608
        %v694 = vunpack.c.h.b16 %v608
        %v695 = vunpack.c.l.b16 %v609
        %v696 = vunpack.c.l.b16 %v610
        %v697 = vunpack.c.h.b16 %v610
        %v698 = vunpack.c.l.b16 %v611
        %v699 = vunpack.c.l.b16 %v612
        %v700 = vunpack.c.h.b16 %v612
        %v701 = vunpack.c.l.b16 %v613
        %v702 = vunpack.c.l.b16 %v614
        %v703 = vunpack.c.h.b16 %v614
        %v704 = vunpack.c.l.b16 %v615
        %v705 = vunpack.c.l.b16 %v616
        %v706 = vunpack.c.h.b16 %v616
        %v707 = vunpack.c.l.b16 %v617
        %v708 = vunpack.c.l.b16 %v618
        %v709 = vunpack.c.h.b16 %v618
        %v710 = vunpack.c.l.b16 %v619
        %v711 = vunpack.c.l.b16 %v620
        %v712 = vunpack.c.h.b16 %v620
        %v713 = vunpack.c.l.b16 %v621
        %v714 = vunpack.c.l.b16 %v622
        %v715 = vunpack.c.h.b16 %v622
        %v716 = vunpack.c.l.b16 %v623
        %v717 = vunpack.c.l.b16 %v624
        %v718 = vunpack.c.h.b16 %v624
        %v719 = vunpack.c.l.b16 %v625
        %v720 = vunpack.c.l.b16 %v626
        %v721 = vunpack.c.h.b16 %v626
        %v722 = vunpack.c.l.b16 %v627
        %v723 = vunpack.c.l.b16 %v628
        %v724 = vunpack.c.h.b16 %v628
        %v725 = vunpack.c.l.b16 %v629
        %v726 = vunpack.c.l.b16 %v630
        %v727 = vunpack.c.h.b16 %v630
        %v728 = vunpack.c.l.b16 %v631
        %v729 = vpack.c.b16 %v684, %v681
        %v730 = vpack.c.b16 %v685, %v682
        %v731 = vpack.c.b16 %v686, %v683
        %v732 = vpack.c.b16 %v690, %v687
        %v733 = vpack.c.b16 %v691, %v688
        %v734 = vpack.c.b16 %v692, %v689
        %v735 = vpack.c.b16 %v696, %v693
        %v736 = vpack.c.b16 %v697, %v694
        %v737 = vpack.c.b16 %v698, %v695
        %v738 = vpack.c.b16 %v702, %v699
        %v739 = vpack.c.b16 %v703, %v700
        %v740 = vpack.c.b16 %v704, %v701
        %v741 = vpack.c.b16 %v708, %v705
        %v742 = vpack.c.b16 %v709, %v706
        %v743 = vpack.c.b16 %v710, %v707
        %v744 = vpack.c.b16 %v714, %v711
        %v745 = vpack.c.b16 %v715, %v712
        %v746 = vpack.c.b16 %v716, %v713
        %v747 = vpack.c.b16 %v720, %v717
        %v748 = vpack.c.b16 %v721, %v718
        %v749 = vpack.c.b16 %v722, %v719
        %v750 = vpack.c.b16 %v726, %v723
        %v751 = vpack.c.b16 %v727, %v724
        %v752 = vpack.c.b16 %v728, %v725
        %777 = vmatprep.subr.bf16.mxu0 %v730
        %778 = vmatpush1.bf16.msra.mxu0 %v729
        %779 = vmatprep.subr.bf16.mxu0 %v733
        %780 = vmatpush1.bf16.msra.mxu0 %v732
        %781 = vmatprep.subr.bf16.mxu0 %v736
        %782 = vmatpush1.bf16.msra.mxu0 %v735
        %783 = vmatprep.subr.bf16.mxu0 %v739
        %784 = vmatpush1.bf16.msra.mxu0 %v738
        %785 = vmatprep.subr.bf16.mxu0 %v742
        %786 = vmatpush1.bf16.msra.mxu0 %v741
        %787 = vmatprep.subr.bf16.mxu0 %v745
        %788 = vmatpush1.bf16.msra.mxu0 %v744
        %789 = vmatprep.subr.bf16.mxu0 %v748
        %790 = vmatpush1.bf16.msra.mxu0 %v747
        %791 = vmatprep.subr.bf16.mxu0 %v751
        %792 = vmatpush1.bf16.msra.mxu0 %v750
        %793 = vmatprep.subr.bf16.mxu0 0
        %794 = vmatpush1.bf16.msra.mxu0 0
        %795 = vmatprep.subr.bf16.mxu0 0
        %796 = vmatpush1.bf16.msra.mxu0 0
        %797 = vmatprep.subr.bf16.mxu0 0
        %798 = vmatpush1.bf16.msra.mxu0 0
        %799 = vmatprep.subr.bf16.mxu0 0
        %800 = vmatpush1.bf16.msra.mxu0 0
        %801 = vmatprep.subr.bf16.mxu0 0
        %802 = vmatpush1.bf16.msra.mxu0 0
        %803 = vmatprep.subr.bf16.mxu0 0
        %804 = vmatpush1.bf16.msra.mxu0 0
        %805 = vmatprep.subr.bf16.mxu0 0
        %806 = vmatpush1.bf16.msra.mxu0 0
        %807 = vmatprep.subr.bf16.mxu0 0
        %808 = vmatpush1.bf16.msra.mxu0 0
        %809 = vmatprep.mubr.bf16.mxu0 0
        %810 = vmatmul.mubr.bf16.gmra.mrb[0].mxu0 %v599
        %v811 = vpop.f32.mrb[0].mxu0
        %v812 = vadd.f32 %v637, %v811
        %v813 = vpop.f32.mrb[0].mxu0
        %v814 = vadd.f32 %v641, %v813
        %v815 = vpop.f32.mrb[0].mxu0
        %v816 = vpop.f32.mrb[0].mxu0
        %817 = vdwg.mxu0
        %818 = vmatprep.subr.bf16.mxu0 0
        %819 = vmatpush1.bf16.msra.mxu0 %v731
        %820 = vmatprep.subr.bf16.mxu0 0
        %821 = vmatpush1.bf16.msra.mxu0 %v734
        %822 = vmatprep.subr.bf16.mxu0 0
        %823 = vmatpush1.bf16.msra.mxu0 %v737
        %824 = vmatprep.subr.bf16.mxu0 0
        %825 = vmatpush1.bf16.msra.mxu0 %v740
        %826 = vmatprep.subr.bf16.mxu0 0
        %827 = vmatpush1.bf16.msra.mxu0 %v743
        %828 = vmatprep.subr.bf16.mxu0 0
        %829 = vmatpush1.bf16.msra.mxu0 %v746
        %830 = vmatprep.subr.bf16.mxu0 0
        %831 = vmatpush1.bf16.msra.mxu0 %v749
        %832 = vmatprep.subr.bf16.mxu0 0
        %833 = vmatpush1.bf16.msra.mxu0 %v752
        %834 = vmatprep.subr.bf16.mxu0 0
        %835 = vmatpush1.bf16.msra.mxu0 0
        %836 = vmatprep.subr.bf16.mxu0 0
        %837 = vmatpush1.bf16.msra.mxu0 0
        %838 = vmatprep.subr.bf16.mxu0 0
        %839 = vmatpush1.bf16.msra.mxu0 0
        %840 = vmatprep.subr.bf16.mxu0 0
        %841 = vmatpush1.bf16.msra.mxu0 0
        %842 = vmatprep.subr.bf16.mxu0 0
        %843 = vmatpush1.bf16.msra.mxu0 0
        %844 = vmatprep.subr.bf16.mxu0 0
        %845 = vmatpush1.bf16.msra.mxu0 0
        %846 = vmatprep.subr.bf16.mxu0 0
        %847 = vmatpush1.bf16.msra.mxu0 0
        %848 = vmatprep.subr.bf16.mxu0 0
        %849 = vmatpush1.bf16.msra.mxu0 0
        %850 = vmatprep.mubr.bf16.mxu0 0
        %851 = vmatmul.mubr.bf16.gmra.mrb[0].mxu0 %v599
        %v852 = vpop.f32.mrb[0].mxu0
        %v853 = vadd.f32 %v645, %v852
        %v854 = vpop.f32.mrb[0].mxu0
        %v855 = vpop.f32.mrb[0].mxu0
        %v856 = vpop.f32.mrb[0].mxu0
        %857 = vdwg.mxu0
        %859 = vrot.lane.b32.xlu0 %v812, 64
        %v860 = vpop.permute.xlu0 %859
        %v862 = vpack.c.bf16 %v812, %v812
        %v863 = vpack.c.bf16 %v860, %v860
        %865 = vrot.lane.b32.xlu0 %v814, 64
        %v866 = vpop.permute.xlu0 %865
        %v868 = vpack.c.bf16 %v814, %v814
        %v869 = vpack.c.bf16 %v866, %v866
        %871 = vrot.lane.b32.xlu0 %v853, 64
        %v872 = vpop.permute.xlu0 %871
        %v874 = vpack.c.bf16 %v853, %v853
        %v875 = vpack.c.bf16 %v872, %v872
        %vm876 = vcmask 523264
        %v878 = vsel %vm876, %v862, 0
        %v881 = vsel %vm876, %v868, 0
        %883 = vmatprep.subr.bf16.mxu0 0
        %884 = vmatpush1.bf16.xpose.msra.mxu0 %v881
        %885 = vmatprep.subr.bf16.mxu0 0
        %886 = vmatpush1.bf16.xpose.msra.mxu0 0
        %887 = vmatprep.subr.bf16.mxu0 0
        %888 = vmatpush1.bf16.xpose.msra.mxu0 0
        %889 = vmatprep.subr.bf16.mxu0 0
        %890 = vmatpush1.bf16.xpose.msra.mxu0 0
        %891 = vmatprep.subr.bf16.mxu0 0
        %892 = vmatpush1.bf16.xpose.msra.mxu0 0
        %893 = vmatprep.subr.bf16.mxu0 0
        %894 = vmatpush1.bf16.xpose.msra.mxu0 0
        %895 = vmatprep.subr.bf16.mxu0 0
        %896 = vmatpush1.bf16.xpose.msra.mxu0 0
        %897 = vmatprep.subr.bf16.mxu0 0
        %898 = vmatpush1.bf16.xpose.msra.mxu0 0
        %899 = vmatprep.subr.bf16.mxu0 0
        %900 = vmatpush1.bf16.xpose.msra.mxu0 0
        %901 = vmatprep.subr.bf16.mxu0 0
        %902 = vmatpush1.bf16.xpose.msra.mxu0 0
        %903 = vmatprep.subr.bf16.mxu0 0
        %904 = vmatpush1.bf16.xpose.msra.mxu0 0
        %905 = vmatprep.subr.bf16.mxu0 0
        %906 = vmatpush1.bf16.xpose.msra.mxu0 0
        %907 = vmatprep.subr.bf16.mxu0 0
        %908 = vmatpush1.bf16.xpose.msra.mxu0 0
        %909 = vmatprep.subr.bf16.mxu0 0
        %910 = vmatpush1.bf16.xpose.msra.mxu0 0
        %911 = vmatprep.subr.bf16.mxu0 0
        %912 = vmatpush1.bf16.xpose.msra.mxu0 0
        %913 = vmatprep.subr.bf16.mxu0 0
        %914 = vmatpush1.bf16.xpose.msra.mxu0 0
        %915 = vmatprep.mubr.bf16.mxu0 0
        %916 = vmatmul.mubr.bf16.gmra.mrb[0].mxu0 %v878
        %v917 = vpop.f32.mrb[0].mxu0
        %v918 = vadd.f32 0.0, %v917
        %v919 = vpop.f32.mrb[0].mxu0
        %v920 = vpop.f32.mrb[0].mxu0
        %v921 = vpop.f32.mrb[0].mxu0
        %922 = vdwg.mxu0
        %v924 = vsel %vm876, %v863, 0
        %v927 = vsel %vm876, %v869, 0
        %929 = vmatprep.subr.bf16.mxu0 0
        %930 = vmatpush1.bf16.xpose.msra.mxu0 %v927
        %931 = vmatprep.subr.bf16.mxu0 0
        %932 = vmatpush1.bf16.xpose.msra.mxu0 0
        %933 = vmatprep.subr.bf16.mxu0 0
        %934 = vmatpush1.bf16.xpose.msra.mxu0 0
        %935 = vmatprep.subr.bf16.mxu0 0
        %936 = vmatpush1.bf16.xpose.msra.mxu0 0
        %937 = vmatprep.subr.bf16.mxu0 0
        %938 = vmatpush1.bf16.xpose.msra.mxu0 0
        %939 = vmatprep.subr.bf16.mxu0 0
        %940 = vmatpush1.bf16.xpose.msra.mxu0 0
        %941 = vmatprep.subr.bf16.mxu0 0
        %942 = vmatpush1.bf16.xpose.msra.mxu0 0
        %943 = vmatprep.subr.bf16.mxu0 0
        %944 = vmatpush1.bf16.xpose.msra.mxu0 0
        %945 = vmatprep.subr.bf16.mxu0 0
        %946 = vmatpush1.bf16.xpose.msra.mxu0 0
        %947 = vmatprep.subr.bf16.mxu0 0
        %948 = vmatpush1.bf16.xpose.msra.mxu0 0
        %949 = vmatprep.subr.bf16.mxu0 0
        %950 = vmatpush1.bf16.xpose.msra.mxu0 0
        %951 = vmatprep.subr.bf16.mxu0 0
        %952 = vmatpush1.bf16.xpose.msra.mxu0 0
        %953 = vmatprep.subr.bf16.mxu0 0
        %954 = vmatpush1.bf16.xpose.msra.mxu0 0
        %955 = vmatprep.subr.bf16.mxu0 0
        %956 = vmatpush1.bf16.xpose.msra.mxu0 0
        %957 = vmatprep.subr.bf16.mxu0 0
        %958 = vmatpush1.bf16.xpose.msra.mxu0 0
        %959 = vmatprep.subr.bf16.mxu0 0
        %960 = vmatpush1.bf16.xpose.msra.mxu0 0
        %961 = vmatprep.mubr.bf16.mxu0 0
        %962 = vmatmul.mubr.bf16.gmra.mrb[0].mxu0 %v924
        %v963 = vpop.f32.mrb[0].mxu0
        %v964 = vadd.f32 0.0, %v963
        %v965 = vpop.f32.mrb[0].mxu0
        %v966 = vpop.f32.mrb[0].mxu0
        %v967 = vpop.f32.mrb[0].mxu0
        %968 = vdwg.mxu0
        %vm969 = vcmask 64512
        %v970 = vsel %vm969, %v918, -inf
        %971 = vmax.xlane.f32.xlu0 %v970
        %v972 = vpop.xlane.xlu0 %971
        %v973 = vsel %vm969, %v964, -inf
        %974 = vmax.xlane.f32.xlu0 %v973
        %v975 = vpop.xlane.xlu0 %974
        %v976 = vsub.f32 %v918, %v972
        %v977 = vsub.f32 %v964, %v975
        %v978 = vmul.f32 %v976, 1.442695
        %v979 = vpow.pop %v978
        %v980 = vmul.f32 %v977, 1.442695
        %v981 = vpow.pop %v980
        %v982 = vsel %vm969, %v979, 0.0
        %983 = vadd.xlane.f32.xlu0 %v982
        %v984 = vpop.xlane.xlu0 %983
        %v985 = vsel %vm969, %v981, 0.0
        %986 = vadd.xlane.f32.xlu0 %v985
        %v987 = vpop.xlane.xlu0 %986
        %v988 = vrcp.pop %v984
        %v989 = vrcp.pop %v987
        %v990 = vmul.f32 %v979, %v988
        %v991 = vmul.f32 %v981, %v989
        %v992 = vpack.c.bf16 %v990, %v990
        %v993 = vpack.c.bf16 %v991, %v991
        %v995 = vsel %vm969, %v992, 0
        %vm997 = vcmask 1043456
        %v999 = vsel %vm997, %v874, 0
        %1001 = vmatprep.subr.bf16.mxu0 0
        %1002 = vmatpush1.bf16.msra.mxu0 %v999
        %1003 = vmatprep.subr.bf16.mxu0 0
        %1004 = vmatpush1.bf16.msra.mxu0 0
        %1005 = vmatprep.subr.bf16.mxu0 0
        %1006 = vmatpush1.bf16.msra.mxu0 0
        %1007 = vmatprep.subr.bf16.mxu0 0
        %1008 = vmatpush1.bf16.msra.mxu0 0
        %1009 = vmatprep.subr.bf16.mxu0 0
        %1010 = vmatpush1.bf16.msra.mxu0 0
        %1011 = vmatprep.subr.bf16.mxu0 0
        %1012 = vmatpush1.bf16.msra.mxu0 0
        %1013 = vmatprep.subr.bf16.mxu0 0
        %1014 = vmatpush1.bf16.msra.mxu0 0
        %1015 = vmatprep.subr.bf16.mxu0 0
        %1016 = vmatpush1.bf16.msra.mxu0 0
        %1017 = vmatprep.subr.bf16.mxu0 0
        %1018 = vmatpush1.bf16.msra.mxu0 0
        %1019 = vmatprep.subr.bf16.mxu0 0
        %1020 = vmatpush1.bf16.msra.mxu0 0
        %1021 = vmatprep.subr.bf16.mxu0 0
        %1022 = vmatpush1.bf16.msra.mxu0 0
        %1023 = vmatprep.subr.bf16.mxu0 0
        %1024 = vmatpush1.bf16.msra.mxu0 0
        %1025 = vmatprep.subr.bf16.mxu0 0
        %1026 = vmatpush1.bf16.msra.mxu0 0
        %1027 = vmatprep.subr.bf16.mxu0 0
        %1028 = vmatpush1.bf16.msra.mxu0 0
        %1029 = vmatprep.subr.bf16.mxu0 0
        %1030 = vmatpush1.bf16.msra.mxu0 0
        %1031 = vmatprep.subr.bf16.mxu0 0
        %1032 = vmatpush1.bf16.msra.mxu0 0
        %1033 = vmatprep.mubr.bf16.mxu0 0
        %1034 = vmatmul.mubr.bf16.gmra.mrb[0].mxu0 %v995
        %v1035 = vpop.f32.mrb[0].mxu0
        %v1036 = vadd.f32 0.0, %v1035
        %v1037 = vpop.f32.mrb[0].mxu0
        %v1038 = vpop.f32.mrb[0].mxu0
        %v1039 = vpop.f32.mrb[0].mxu0
        %1040 = vdwg.mxu0
        %v1042 = vsel %vm969, %v993, 0
        %v1045 = vsel %vm997, %v875, 0
        %1047 = vmatprep.subr.bf16.mxu0 0
        %1048 = vmatpush1.bf16.msra.mxu0 %v1045
        %1049 = vmatprep.subr.bf16.mxu0 0
        %1050 = vmatpush1.bf16.msra.mxu0 0
        %1051 = vmatprep.subr.bf16.mxu0 0
        %1052 = vmatpush1.bf16.msra.mxu0 0
        %1053 = vmatprep.subr.bf16.mxu0 0
        %1054 = vmatpush1.bf16.msra.mxu0 0
        %1055 = vmatprep.subr.bf16.mxu0 0
        %1056 = vmatpush1.bf16.msra.mxu0 0
        %1057 = vmatprep.subr.bf16.mxu0 0
        %1058 = vmatpush1.bf16.msra.mxu0 0
        %1059 = vmatprep.subr.bf16.mxu0 0
        %1060 = vmatpush1.bf16.msra.mxu0 0
        %1061 = vmatprep.subr.bf16.mxu0 0
        %1062 = vmatpush1.bf16.msra.mxu0 0
        %1063 = vmatprep.subr.bf16.mxu0 0
        %1064 = vmatpush1.bf16.msra.mxu0 0
        %1065 = vmatprep.subr.bf16.mxu0 0
        %1066 = vmatpush1.bf16.msra.mxu0 0
        %1067 = vmatprep.subr.bf16.mxu0 0
        %1068 = vmatpush1.bf16.msra.mxu0 0
        %1069 = vmatprep.subr.bf16.mxu0 0
        %1070 = vmatpush1.bf16.msra.mxu0 0
        %1071 = vmatprep.subr.bf16.mxu0 0
        %1072 = vmatpush1.bf16.msra.mxu0 0
        %1073 = vmatprep.subr.bf16.mxu0 0
        %1074 = vmatpush1.bf16.msra.mxu0 0
        %1075 = vmatprep.subr.bf16.mxu0 0
        %1076 = vmatpush1.bf16.msra.mxu0 0
        %1077 = vmatprep.subr.bf16.mxu0 0
        %1078 = vmatpush1.bf16.msra.mxu0 0
        %1079 = vmatprep.mubr.bf16.mxu0 0
        %1080 = vmatmul.mubr.bf16.gmra.mrb[0].mxu0 %v1042
        %v1081 = vpop.f32.mrb[0].mxu0
        %v1082 = vadd.f32 0.0, %v1081
        %v1083 = vpop.f32.mrb[0].mxu0
        %v1084 = vpop.f32.mrb[0].mxu0
        %v1085 = vpop.f32.mrb[0].mxu0
        %1086 = vdwg.mxu0
        %1088 = vrot.lane.b32.xlu0 %v1082, 64
        %v1089 = vpop.permute.xlu0 %1088
        %v1091 = vsel %vm876, %v1036, %v1089
        %v1092 = vpack.c.bf16 %v1091, %v1091
        %v1093 = vld [vmem:[#allocation7] sm:$0xf]
        %v1094 = vld [vmem:[#allocation7 + $0x4] sm:$0xf]
        %v1095 = vld [vmem:[#allocation7 + $0x8] sm:$0xf]
        %v1096 = vld [vmem:[#allocation7 + $0xc] sm:$0xf]
        %v1097 = vld [vmem:[#allocation7 + $0x10] sm:$0xf]
        %v1098 = vld [vmem:[#allocation7 + $0x14] sm:$0xf]
        %v1099 = vld [vmem:[#allocation7 + $0x18] sm:$0xf]
        %v1100 = vld [vmem:[#allocation7 + $0x1c] sm:$0xf]
        %v1101 = vld [vmem:[#allocation7 + $0x20] sm:$0xf]
        %v1102 = vld [vmem:[#allocation7 + $0x24] sm:$0xf]
        %v1103 = vld [vmem:[#allocation7 + $0x28] sm:$0xf]
        %v1104 = vld [vmem:[#allocation7 + $0x2c] sm:$0xf]
        %v1105 = vld [vmem:[#allocation7 + $0x30] sm:$0xf]
        %v1106 = vld [vmem:[#allocation7 + $0x34] sm:$0xf]
        %v1107 = vld [vmem:[#allocation7 + $0x38] sm:$0xf]
        %v1108 = vld [vmem:[#allocation7 + $0x3c] sm:$0xf]
        %v1109 = vld [vmem:[%s6] sm:$0x1]
        %v1111 = vlaneseq
        %v1112 = vshrl.u32 %v1111, 7
        %v1113 = vsub.s32 0, %v1112
        %v1114 = vrot.slane %v1109, %v1113
        %v1132 = vunpack.c.l.b16 %v1093
        %v1133 = vunpack.c.l.b16 %v1094
        %v1134 = vunpack.c.l.b16 %v1095
        %v1135 = vunpack.c.l.b16 %v1096
        %v1136 = vunpack.c.l.b16 %v1097
        %v1137 = vunpack.c.l.b16 %v1098
        %v1138 = vunpack.c.l.b16 %v1099
        %v1139 = vunpack.c.l.b16 %v1100
        %v1140 = vunpack.c.l.b16 %v1101
        %v1141 = vunpack.c.l.b16 %v1102
        %v1142 = vunpack.c.l.b16 %v1103
        %v1143 = vunpack.c.l.b16 %v1104
        %v1144 = vunpack.c.l.b16 %v1105
        %v1145 = vunpack.c.l.b16 %v1106
        %v1146 = vunpack.c.l.b16 %v1107
        %v1147 = vunpack.c.l.b16 %v1108
        %v1148 = vpack.c.b16 %v1133, %v1132
        %v1149 = vpack.c.b16 %v1135, %v1134
        %v1150 = vpack.c.b16 %v1137, %v1136
        %v1151 = vpack.c.b16 %v1139, %v1138
        %v1152 = vpack.c.b16 %v1141, %v1140
        %v1153 = vpack.c.b16 %v1143, %v1142
        %v1154 = vpack.c.b16 %v1145, %v1144
        %v1155 = vpack.c.b16 %v1147, %v1146
        %1164 = vmatprep.subr.bf16.mxu0 0
        %1165 = vmatpush1.bf16.msra.mxu0 %v1148
        %1166 = vmatprep.subr.bf16.mxu0 0
        %1167 = vmatpush1.bf16.msra.mxu0 %v1149
        %1168 = vmatprep.subr.bf16.mxu0 0
        %1169 = vmatpush1.bf16.msra.mxu0 %v1150
        %1170 = vmatprep.subr.bf16.mxu0 0
        %1171 = vmatpush1.bf16.msra.mxu0 %v1151
        %1172 = vmatprep.subr.bf16.mxu0 0
        %1173 = vmatpush1.bf16.msra.mxu0 %v1152
        %1174 = vmatprep.subr.bf16.mxu0 0
        %1175 = vmatpush1.bf16.msra.mxu0 %v1153
        %1176 = vmatprep.subr.bf16.mxu0 0
        %1177 = vmatpush1.bf16.msra.mxu0 %v1154
        %1178 = vmatprep.subr.bf16.mxu0 0
        %1179 = vmatpush1.bf16.msra.mxu0 %v1155
        %1180 = vmatprep.subr.bf16.mxu0 0
        %1181 = vmatpush1.bf16.msra.mxu0 0
        %1182 = vmatprep.subr.bf16.mxu0 0
        %1183 = vmatpush1.bf16.msra.mxu0 0
        %1184 = vmatprep.subr.bf16.mxu0 0
        %1185 = vmatpush1.bf16.msra.mxu0 0
        %1186 = vmatprep.subr.bf16.mxu0 0
        %1187 = vmatpush1.bf16.msra.mxu0 0
        %1188 = vmatprep.subr.bf16.mxu0 0
        %1189 = vmatpush1.bf16.msra.mxu0 0
        %1190 = vmatprep.subr.bf16.mxu0 0
        %1191 = vmatpush1.bf16.msra.mxu0 0
        %1192 = vmatprep.subr.bf16.mxu0 0
        %1193 = vmatpush1.bf16.msra.mxu0 0
        %1194 = vmatprep.subr.bf16.mxu0 0
        %1195 = vmatpush1.bf16.msra.mxu0 0
        %1196 = vmatprep.mubr.bf16.mxu0 0
        %1197 = vmatmul.mubr.bf16.gmra.mrb[0].mxu0 %v1092
        %v1198 = vpop.f32.mrb[0].mxu0
        %v1199 = vadd.f32 %v1114, %v1198
        %v1200 = vpop.f32.mrb[0].mxu0
        %v1201 = vpop.f32.mrb[0].mxu0
        %v1202 = vpop.f32.mrb[0].mxu0
        %1203 = vdwg.mxu0
        %v1204 = vadd.f32 %v1199, %v598
        %v1205 = vld [vmem:[%s7] sm:$0x1]
        %v1206 = vld [vmem:[%s8] sm:$0x1]
        %1207 = vadd.xlane.f32.xlu0 %v1204
        %v1208 = vpop.xlane.xlu0 %1207
        %v1209 = vmul.f32 %v1208, %v575
        %v1210 = vsub.f32 %v1204, %v1209
        %v1211 = vmul.f32 %v1210, %v1210
        %1212 = vadd.xlane.f32.xlu0 %v1211
        %v1213 = vpop.xlane.xlu0 %1212
        %v1214 = vmul.f32 %v1213, %v575
        %v1215 = vadd.f32 %v1214, 1e-12
        %v1216 = vrsqrt.pop %v1215
        %v1217 = vmul.f32 %v1210, %v1216
        %v1219 = vlaneseq
        %v1220 = vshrl.u32 %v1219, 7
        %v1221 = vsub.s32 0, %v1220
        %v1222 = vrot.slane %v1205, %v1221
        %v1224 = vmul.f32 %v1217, %v1222
        %v1226 = vlaneseq
        %v1227 = vshrl.u32 %v1226, 7
        %v1228 = vsub.s32 0, %v1227
        %v1229 = vrot.slane %v1206, %v1228
        %v1231 = vadd.f32 %v1224, %v1229
        %v1232 = vpack.c.bf16 %v1231, %v1231
        %v1233 = vld [vmem:[#allocation8] sm:$0xff]
        %v1234 = vld [vmem:[#allocation8 + $0x8] sm:$0xff]
        %v1235 = vld [vmem:[#allocation8 + $0x10] sm:$0xff]
        %v1236 = vld [vmem:[#allocation8 + $0x18] sm:$0xff]
        %v1237 = vld [vmem:[#allocation8 + $0x20] sm:$0xff]
        %v1238 = vld [vmem:[#allocation8 + $0x28] sm:$0xff]
        %v1239 = vld [vmem:[#allocation8 + $0x30] sm:$0xff]
        %v1240 = vld [vmem:[#allocation8 + $0x38] sm:$0xff]
        %v1241 = vld [vmem:[#allocation8 + $0x40] sm:$0xff]
        %v1242 = vld [vmem:[#allocation8 + $0x48] sm:$0xff]
        %v1243 = vld [vmem:[#allocation8 + $0x50] sm:$0xff]
        %v1244 = vld [vmem:[#allocation8 + $0x58] sm:$0xff]
        %v1245 = vld [vmem:[#allocation8 + $0x60] sm:$0xff]
        %v1246 = vld [vmem:[#allocation8 + $0x68] sm:$0xff]
        %v1247 = vld [vmem:[#allocation8 + $0x70] sm:$0xff]
        %v1248 = vld [vmem:[#allocation8 + $0x78] sm:$0xff]
        %v1249 = vld [vmem:[%s10] sm:$0x3]
        %v1251 = vlaneseq
        %v1252 = vshrl.u32 %v1251, 7
        %v1253 = vsub.s32 0, %v1252
        %v1254 = vrot.slane %v1249, %v1253
        %v1255 = vlaneseq
        %v1256 = vshrl.u32 %v1255, 7
        %v1257 = vsub.s32 1, %v1256
        %v1258 = vrot.slane %v1249, %v1257
        %v1277 = vunpack.c.l.b16 %v1233
        %v1278 = vunpack.c.h.b16 %v1233
        %v1279 = vunpack.c.l.b16 %v1234
        %v1280 = vunpack.c.h.b16 %v1234
        %v1281 = vunpack.c.l.b16 %v1235
        %v1282 = vunpack.c.h.b16 %v1235
        %v1283 = vunpack.c.l.b16 %v1236
        %v1284 = vunpack.c.h.b16 %v1236
        %v1285 = vunpack.c.l.b16 %v1237
        %v1286 = vunpack.c.h.b16 %v1237
        %v1287 = vunpack.c.l.b16 %v1238
        %v1288 = vunpack.c.h.b16 %v1238
        %v1289 = vunpack.c.l.b16 %v1239
        %v1290 = vunpack.c.h.b16 %v1239
        %v1291 = vunpack.c.l.b16 %v1240
        %v1292 = vunpack.c.h.b16 %v1240
        %v1293 = vunpack.c.l.b16 %v1241
        %v1294 = vunpack.c.h.b16 %v1241
        %v1295 = vunpack.c.l.b16 %v1242
        %v1296 = vunpack.c.h.b16 %v1242
        %v1297 = vunpack.c.l.b16 %v1243
        %v1298 = vunpack.c.h.b16 %v1243
        %v1299 = vunpack.c.l.b16 %v1244
        %v1300 = vunpack.c.h.b16 %v1244
        %v1301 = vunpack.c.l.b16 %v1245
        %v1302 = vunpack.c.h.b16 %v1245
        %v1303 = vunpack.c.l.b16 %v1246
        %v1304 = vunpack.c.h.b16 %v1246
        %v1305 = vunpack.c.l.b16 %v1247
        %v1306 = vunpack.c.h.b16 %v1247
        %v1307 = vunpack.c.l.b16 %v1248
        %v1308 = vunpack.c.h.b16 %v1248
        %v1309 = vpack.c.b16 %v1279, %v1277
        %v1310 = vpack.c.b16 %v1280, %v1278
        %v1311 = vpack.c.b16 %v1283, %v1281
        %v1312 = vpack.c.b16 %v1284, %v1282
        %v1313 = vpack.c.b16 %v1287, %v1285
        %v1314 = vpack.c.b16 %v1288, %v1286
        %v1315 = vpack.c.b16 %v1291, %v1289
        %v1316 = vpack.c.b16 %v1292, %v1290
        %v1317 = vpack.c.b16 %v1295, %v1293
        %v1318 = vpack.c.b16 %v1296, %v1294
        %v1319 = vpack.c.b16 %v1299, %v1297
        %v1320 = vpack.c.b16 %v1300, %v1298
        %v1321 = vpack.c.b16 %v1303, %v1301
        %v1322 = vpack.c.b16 %v1304, %v1302
        %v1323 = vpack.c.b16 %v1307, %v1305
        %v1324 = vpack.c.b16 %v1308, %v1306
        %1341 = vmatprep.subr.bf16.mxu0 %v1310
        %1342 = vmatpush1.bf16.msra.mxu0 %v1309
        %1343 = vmatprep.subr.bf16.mxu0 %v1312
        %1344 = vmatpush1.bf16.msra.mxu0 %v1311
        %1345 = vmatprep.subr.bf16.mxu0 %v1314
        %1346 = vmatpush1.bf16.msra.mxu0 %v1313
        %1347 = vmatprep.subr.bf16.mxu0 %v1316
        %1348 = vmatpush1.bf16.msra.mxu0 %v1315
        %1349 = vmatprep.subr.bf16.mxu0 %v1318
        %1350 = vmatpush1.bf16.msra.mxu0 %v1317
        %1351 = vmatprep.subr.bf16.mxu0 %v1320
        %1352 = vmatpush1.bf16.msra.mxu0 %v1319
        %1353 = vmatprep.subr.bf16.mxu0 %v1322
        %1354 = vmatpush1.bf16.msra.mxu0 %v1321
        %1355 = vmatprep.subr.bf16.mxu0 %v1324
        %1356 = vmatpush1.bf16.msra.mxu0 %v1323
        %1357 = vmatprep.subr.bf16.mxu0 0
        %1358 = vmatpush1.bf16.msra.mxu0 0
        %1359 = vmatprep.subr.bf16.mxu0 0
        %1360 = vmatpush1.bf16.msra.mxu0 0
        %1361 = vmatprep.subr.bf16.mxu0 0
        %1362 = vmatpush1.bf16.msra.mxu0 0
        %1363 = vmatprep.subr.bf16.mxu0 0
        %1364 = vmatpush1.bf16.msra.mxu0 0
        %1365 = vmatprep.subr.bf16.mxu0 0
        %1366 = vmatpush1.bf16.msra.mxu0 0
        %1367 = vmatprep.subr.bf16.mxu0 0
        %1368 = vmatpush1.bf16.msra.mxu0 0
        %1369 = vmatprep.subr.bf16.mxu0 0
        %1370 = vmatpush1.bf16.msra.mxu0 0
        %1371 = vmatprep.subr.bf16.mxu0 0
        %1372 = vmatpush1.bf16.msra.mxu0 0
        %1373 = vmatprep.mubr.bf16.mxu0 0
        %1374 = vmatmul.mubr.bf16.gmra.mrb[0].mxu0 %v1232
        %v1375 = vpop.f32.mrb[0].mxu0
        %v1376 = vadd.f32 %v1254, %v1375
        %v1377 = vpop.f32.mrb[0].mxu0
        %v1378 = vadd.f32 %v1258, %v1377
        %v1379 = vpop.f32.mrb[0].mxu0
        %v1380 = vpop.f32.mrb[0].mxu0
        %1381 = vdwg.mxu0
        %v1382 = vmul.f32 %v1376, 0.5
        %v1383 = vmul.f32 %v1378, 0.5
        %v1384 = vmul.f32 %v1376, 0.044715
        %v1385 = vmul.f32 %v1378, 0.044715
        %v1386 = vmul.f32 %v1384, %v1376
        %v1387 = vmul.f32 %v1385, %v1378
        %v1388 = vmul.f32 %v1386, %v1376
        %v1389 = vmul.f32 %v1387, %v1378
        %v1390 = vadd.f32 %v1376, %v1388
        %v1391 = vadd.f32 %v1378, %v1389
        %v1392 = vmul.f32 %v1390, 0.7978846
        %v1393 = vmul.f32 %v1391, 0.7978846
        %v1394 = vtanh.pop %v1392
        %v1395 = vtanh.pop %v1393
        %v1396 = vadd.f32 %v1394, 1.0
        %v1397 = vadd.f32 %v1395, 1.0
        %v1398 = vmul.f32 %v1382, %v1396
        %v1399 = vmul.f32 %v1383, %v1397
        %v1400 = vpack.c.bf16 %v1398, %v1398
        %v1401 = vpack.c.bf16 %v1399, %v1399
        %v1402 = vld [vmem:[#allocation10] sm:$0xf]
        %v1403 = vld [vmem:[#allocation10 + $0x4] sm:$0xf]
        %v1404 = vld [vmem:[#allocation10 + $0x8] sm:$0xf]
        %v1405 = vld [vmem:[#allocation10 + $0xc] sm:$0xf]
        %v1406 = vld [vmem:[#allocation10 + $0x10] sm:$0xf]
        %v1407 = vld [vmem:[#allocation10 + $0x14] sm:$0xf]
        %v1408 = vld [vmem:[#allocation10 + $0x18] sm:$0xf]
        %v1409 = vld [vmem:[#allocation10 + $0x1c] sm:$0xf]
        %v1410 = vld [vmem:[#allocation10 + $0x20] sm:$0xf]
        %v1411 = vld [vmem:[#allocation10 + $0x24] sm:$0xf]
        %v1412 = vld [vmem:[#allocation10 + $0x28] sm:$0xf]
        %v1413 = vld [vmem:[#allocation10 + $0x2c] sm:$0xf]
        %v1414 = vld [vmem:[#allocation10 + $0x30] sm:$0xf]
        %v1415 = vld [vmem:[#allocation10 + $0x34] sm:$0xf]
        %v1416 = vld [vmem:[#allocation10 + $0x38] sm:$0xf]
        %v1417 = vld [vmem:[#allocation10 + $0x3c] sm:$0xf]
        %v1418 = vld [vmem:[#allocation10 + $0x40] sm:$0xf]
        %v1419 = vld [vmem:[#allocation10 + $0x44] sm:$0xf]
        %v1420 = vld [vmem:[#allocation10 + $0x48] sm:$0xf]
        %v1421 = vld [vmem:[#allocation10 + $0x4c] sm:$0xf]
        %v1422 = vld [vmem:[#allocation10 + $0x50] sm:$0xf]
        %v1423 = vld [vmem:[#allocation10 + $0x54] sm:$0xf]
        %v1424 = vld [vmem:[#allocation10 + $0x58] sm:$0xf]
        %v1425 = vld [vmem:[#allocation10 + $0x5c] sm:$0xf]
        %v1426 = vld [vmem:[#allocation10 + $0x60] sm:$0xf]
        %v1427 = vld [vmem:[#allocation10 + $0x64] sm:$0xf]
        %v1428 = vld [vmem:[#allocation10 + $0x68] sm:$0xf]
        %v1429 = vld [vmem:[#allocation10 + $0x6c] sm:$0xf]
        %v1430 = vld [vmem:[#allocation10 + $0x70] sm:$0xf]
        %v1431 = vld [vmem:[#allocation10 + $0x74] sm:$0xf]
        %v1432 = vld [vmem:[#allocation10 + $0x78] sm:$0xf]
        %v1433 = vld [vmem:[#allocation10 + $0x7c] sm:$0xf]
        %v1434 = vld [vmem:[%s12] sm:$0x1]
        %v1436 = vlaneseq
        %v1437 = vshrl.u32 %v1436, 7
        %v1438 = vsub.s32 0, %v1437
        %v1439 = vrot.slane %v1434, %v1438
        %v1473 = vunpack.c.l.b16 %v1402
        %v1474 = vunpack.c.l.b16 %v1403
        %v1475 = vunpack.c.l.b16 %v1404
        %v1476 = vunpack.c.l.b16 %v1405
        %v1477 = vunpack.c.l.b16 %v1406
        %v1478 = vunpack.c.l.b16 %v1407
        %v1479 = vunpack.c.l.b16 %v1408
        %v1480 = vunpack.c.l.b16 %v1409
        %v1481 = vunpack.c.l.b16 %v1410
        %v1482 = vunpack.c.l.b16 %v1411
        %v1483 = vunpack.c.l.b16 %v1412
        %v1484 = vunpack.c.l.b16 %v1413
        %v1485 = vunpack.c.l.b16 %v1414
        %v1486 = vunpack.c.l.b16 %v1415
        %v1487 = vunpack.c.l.b16 %v1416
        %v1488 = vunpack.c.l.b16 %v1417
        %v1489 = vunpack.c.l.b16 %v1418
        %v1490 = vunpack.c.l.b16 %v1419
        %v1491 = vunpack.c.l.b16 %v1420
        %v1492 = vunpack.c.l.b16 %v1421
        %v1493 = vunpack.c.l.b16 %v1422
        %v1494 = vunpack.c.l.b16 %v1423
        %v1495 = vunpack.c.l.b16 %v1424
        %v1496 = vunpack.c.l.b16 %v1425
        %v1497 = vunpack.c.l.b16 %v1426
        %v1498 = vunpack.c.l.b16 %v1427
        %v1499 = vunpack.c.l.b16 %v1428
        %v1500 = vunpack.c.l.b16 %v1429
        %v1501 = vunpack.c.l.b16 %v1430
        %v1502 = vunpack.c.l.b16 %v1431
        %v1503 = vunpack.c.l.b16 %v1432
        %v1504 = vunpack.c.l.b16 %v1433
        %v1505 = vpack.c.b16 %v1474, %v1473
        %v1506 = vpack.c.b16 %v1476, %v1475
        %v1507 = vpack.c.b16 %v1478, %v1477
        %v1508 = vpack.c.b16 %v1480, %v1479
        %v1509 = vpack.c.b16 %v1482, %v1481
        %v1510 = vpack.c.b16 %v1484, %v1483
        %v1511 = vpack.c.b16 %v1486, %v1485
        %v1512 = vpack.c.b16 %v1488, %v1487
        %v1513 = vpack.c.b16 %v1490, %v1489
        %v1514 = vpack.c.b16 %v1492, %v1491
        %v1515 = vpack.c.b16 %v1494, %v1493
        %v1516 = vpack.c.b16 %v1496, %v1495
        %v1517 = vpack.c.b16 %v1498, %v1497
        %v1518 = vpack.c.b16 %v1500, %v1499
        %v1519 = vpack.c.b16 %v1502, %v1501
        %v1520 = vpack.c.b16 %v1504, %v1503
        %1537 = vmatprep.subr.bf16.mxu0 0
        %1538 = vmatpush1.bf16.msra.mxu0 %v1505
        %1539 = vmatprep.subr.bf16.mxu0 0
        %1540 = vmatpush1.bf16.msra.mxu0 %v1506
        %1541 = vmatprep.subr.bf16.mxu0 0
        %1542 = vmatpush1.bf16.msra.mxu0 %v1507
        %1543 = vmatprep.subr.bf16.mxu0 0
        %1544 = vmatpush1.bf16.msra.mxu0 %v1508
        %1545 = vmatprep.subr.bf16.mxu0 0
        %1546 = vmatpush1.bf16.msra.mxu0 %v1509
        %1547 = vmatprep.subr.bf16.mxu0 0
        %1548 = vmatpush1.bf16.msra.mxu0 %v1510
        %1549 = vmatprep.subr.bf16.mxu0 0
        %1550 = vmatpush1.bf16.msra.mxu0 %v1511
        %1551 = vmatprep.subr.bf16.mxu0 0
        %1552 = vmatpush1.bf16.msra.mxu0 %v1512
        %1553 = vmatprep.subr.bf16.mxu0 0
        %1554 = vmatpush1.bf16.msra.mxu0 %v1513
        %1555 = vmatprep.subr.bf16.mxu0 0
        %1556 = vmatpush1.bf16.msra.mxu0 %v1514
        %1557 = vmatprep.subr.bf16.mxu0 0
        %1558 = vmatpush1.bf16.msra.mxu0 %v1515
        %1559 = vmatprep.subr.bf16.mxu0 0
        %1560 = vmatpush1.bf16.msra.mxu0 %v1516
        %1561 = vmatprep.subr.bf16.mxu0 0
        %1562 = vmatpush1.bf16.msra.mxu0 %v1517
        %1563 = vmatprep.subr.bf16.mxu0 0
        %1564 = vmatpush1.bf16.msra.mxu0 %v1518
        %1565 = vmatprep.subr.bf16.mxu0 0
        %1566 = vmatpush1.bf16.msra.mxu0 %v1519
        %1567 = vmatprep.subr.bf16.mxu0 0
        %1568 = vmatpush1.bf16.msra.mxu0 %v1520
        %1569 = vmatprep.mubr.bf16.mxu0 %v1401
        %1570 = vmatmul.mubr.bf16.gmra.mrb[0].mxu0 %v1400
        %v1571 = vpop.f32.mrb[0].mxu0
        %v1572 = vadd.f32 %v1439, %v1571
        %v1573 = vpop.f32.mrb[0].mxu0
        %v1574 = vpop.f32.mrb[0].mxu0
        %v1575 = vpop.f32.mrb[0].mxu0
        %1576 = vdwg.mxu0
        %v1577 = vadd.f32 %v1572, %v1231
        %v1578 = vld [vmem:[%s13] sm:$0x1]
        %v1579 = vld [vmem:[%s14] sm:$0x1]
        %1580 = vadd.xlane.f32.xlu0 %v1577
        %v1581 = vpop.xlane.xlu0 %1580
        %v1582 = vmul.f32 %v1581, %v575
        %v1583 = vsub.f32 %v1577, %v1582
        %v1584 = vmul.f32 %v1583, %v1583
        %1585 = vadd.xlane.f32.xlu0 %v1584
        %v1586 = vpop.xlane.xlu0 %1585
        %v1587 = vmul.f32 %v1586, %v575
        %v1588 = vadd.f32 %v1587, 1e-12
        %v1589 = vrsqrt.pop %v1588
        %v1590 = vmul.f32 %v1583, %v1589
        %v1592 = vlaneseq
        %v1593 = vshrl.u32 %v1592, 7
        %v1594 = vsub.s32 0, %v1593
        %v1595 = vrot.slane %v1578, %v1594
        %v1597 = vmul.f32 %v1590, %v1595
        %v1599 = vlaneseq
        %v1600 = vshrl.u32 %v1599, 7
        %v1601 = vsub.s32 0, %v1600
        %v1602 = vrot.slane %v1579, %v1601
        %v1604 = vadd.f32 %v1597, %v1602
        %v1605 = vpack.c.bf16 %v1604, %v1604
        %1606 = vst [vmem:[%s567] sm:$0xf] %v1605
        %s1607 = sand.u32 %s362, 1
        %s1608 = scalar_lea.sflag [#allocation4], %s1607
        %s1609 = sand.u32 %s362, 1
        %s1610 = smul.addr %s1609, 4
        %s1611 = scalar_lea.vmem [#allocation11], %s1610
        // Predicated region
        $region101: #{tpu_custom_call.1} parent=79 // pred_check
          %p1612 = pneg %p372
        $region102: #{tpu_custom_call.1} parent=79 // pred_check_branch
          %1614 = sbr.rel (%p1612) target = $region104
        $region103: #{tpu_custom_call.1} parent=79 // pred_region
          %s1616 = ssub.s32 64, 64
          %1617 = vsyncadd %s1608, %s1616
          %s1618 = smul.addr %s34, 64
          %s1619 = scalar_lea.hbm %s15, %s1618
          %s1621 = sshll.u32 %s1611, 4
          %s1622 = int_to_ptr.vmem [resolvable:$true] %s1621
          %1624 = dma.vmem_to_hbm [thread:$0]  %s1622, 64, %s1619, %s1608
        $region104: #{tpu_custom_call.1} parent=79 // pred_fallthru
          _
      $region80: #{tpu_custom_call.1} parent=5 // pred_fallthru
        _
      %p1625 = scmp.le.s32.totalorder 2, %s29
      // Predicated region
      $region105: #{tpu_custom_call.1} parent=5 // pred_check
        %p1626 = pneg %p1625
      $region106: #{tpu_custom_call.1} parent=5 // pred_check_branch
        %1628 = sbr.rel (%p1626) target = $region108
      $region107: #{tpu_custom_call.1} parent=5 // pred_region
        %s1629 = ssub.s32 %s29, 2
        // Predicated region
        $region109: #{tpu_custom_call.1} parent=107 // pred_check
          %p1630 = pneg %p378
        $region110: #{tpu_custom_call.1} parent=107 // pred_check_branch
          %1632 = sbr.rel (%p1630) target = $region112
        $region111: #{tpu_custom_call.1} parent=107 // pred_region
          %s1633 = sand.u32 %s363, 1
          %s1634 = scalar_lea.sflag [#allocation4], %s1633
          %s1635 = sand.u32 %s363, 1
          %s1636 = smul.addr %s1635, 4
          %s1637 = scalar_lea.vmem [#allocation11], %s1636
          %1638 = dma.done %s1634, 64
        $region112: #{tpu_custom_call.1} parent=107 // pred_fallthru
          _
      $region108: #{tpu_custom_call.1} parent=5 // pred_fallthru
        _
    $region6: #{tpu_custom_call.1} parent=1 // loop_footer
      %s33 = sadd.s32 1, %s29
    $region7: #{tpu_custom_call.1} parent=1 // loop_footer_branch
      %28 = sbr.rel target = $region3
    $region8: #{tpu_custom_call.1} parent=1 // loop_exit
      _
    %1639 = vsyncpa [#allocation3], 1
    %s1640 = scalar_lea.sflag [#allocation3], 1
    %1641 = vsyncpa %s1640, 1
    %1642 = vsyncpa [#allocation6], 1
    %1643 = vsyncpa [#allocation9], 1
    %1644 = vsyncpa [#allocation4], 1
    %s1645 = scalar_lea.sflag [#allocation4], 1
    %1646 = vsyncpa %s1645, 1

</llo_original>
